<compile_context>
chip_gen: v5e
topology: v5e:2x2
jax: 0.10.0
libtpu: 0.0.40
codegen_flags: <defaults>
</compile_context>

<pallas_src>
import jax
import jax.numpy as jnp
import numpy as np
from jax.experimental import pallas as pl
from jax.experimental.pallas import tpu as pltpu

_EPS = 1e-5  # nn.BatchNorm2d default eps


# ----------------------------------------------------------------------------
# tiling / budget helpers
# ----------------------------------------------------------------------------
def _choose_row_tile(H):
    """Largest row tile (multiple of 8, divides H, <= 32) -- bounds per-step
    VMEM and keeps >= 2 row tiles once H >= 16 so the pipeline / megacore split
    is actually exercised."""
    assert H % 8 == 0, "H must be a multiple of 8"  # TODO(synk): ragged last tile
    cap = min(32, H // 2) if H >= 16 else H
    cap = max(cap, 8)
    tr = 8
    for t in range(8, cap + 1, 8):
        if H % t == 0:
            tr = t
    return tr


def _vmem_limit_bytes(per_step_bytes):
    # BlockSpec pipelining double-buffers the per-step working set; add fixed
    # headroom for Mosaic-internal scratch and clamp so a v6e-sized request
    # still fits v7x's 64 MiB physical VMEM.
    return int(min(max(2 * per_step_bytes + (4 << 20), 16 << 20), 60 << 20))


# ----------------------------------------------------------------------------
# host-side weight / BN preparation
# ----------------------------------------------------------------------------
def _banded_conv_weight(w_oihw, width):
    """(Co, Ci, 3, 3) OIHW conv weight -> (3, width*Ci, width*Co) bf16 banded
    matrices.  B[kh, wi*Ci+ci, wo*Co+co] = w[co, ci, kh, wi-wo+1] for
    |wi - wo| <= 1 and zero otherwise, which encodes padding=1 along W."""
    w = np.asarray(w_oihw, np.float32)
    co_n, ci_n = w.shape[0], w.shape[1]
    band = np.zeros((3, width * ci_n, width * co_n), np.float32)
    for kh in range(3):
        for wo in range(width):
            for kw in range(3):
                wi = wo + kw - 1
                if 0 <= wi < width:
                    band[kh, wi * ci_n:(wi + 1) * ci_n,
                         wo * co_n:(wo + 1) * co_n] = w[:, :, kh, kw].T
    return jnp.asarray(band, jnp.bfloat16)


def _bn_scale_shift(stats, gamma, beta, m, w, c):
    """Phase 2 of the two-phase BN: reduce per-tile per-lane partials (rows
    0=sum, 1=sumsq of a (..., 8, W*C) stats tensor) into per-channel
    scale/shift, pre-tiled to (1, W*C) for lane-dense application."""
    s = stats[:, :, 0, :].reshape(-1, w, c).sum(axis=(0, 1))
    ss = stats[:, :, 1, :].reshape(-1, w, c).sum(axis=(0, 1))
    mean = s / m
    var = ss / m - mean * mean
    scale = gamma * jax.lax.rsqrt(var + _EPS)
    shift = beta - mean * scale
    tile = lambda v: jnp.tile(v, w).reshape(1, w * c)
    return tile(scale), tile(shift)


# ----------------------------------------------------------------------------
# conv stage kernel: [optional BN-affine + ReLU] -> 3x3 conv -> partial stats
# ----------------------------------------------------------------------------
def _make_conv_stage_kernel(tr, apply_input_act):
    def kernel(*refs):
        if apply_input_act:
            (xc_ref, xu_ref, xd_ref, b_ref, sc_ref, sh_ref,
             y_ref, st_ref, rows_ref) = refs
        else:
            xc_ref, xu_ref, xd_ref, b_ref, y_ref, st_ref, rows_ref = refs
            sc_ref = sh_ref = None

        i = pl.program_id(1)
        last = pl.num_programs(1) - 1

        def act(v):
            v = v.astype(jnp.float32)
            if apply_input_act:
                # BN1 affine + ReLU, pre-tiled per lane -> pure VPU, no relayout.
                v = jnp.maximum(v * sc_ref[...] + sh_ref[...], 0.0)
            return v

        # H halo rows (padding=1 along H): zeroed AFTER the input activation so
        # conv2's zero padding is zeros of the activation, not act(0).
        up = jnp.where(i == 0, 0.0, act(xu_ref[0, 7:8, :]))       # row above tile
        dn = jnp.where(i == last, 0.0, act(xd_ref[0, 0:1, :]))    # row below tile

        # bf16 halo-row scratch (Tr+2, W*C): matmul operands only.
        rows_ref[0:1, :] = up.astype(jnp.bfloat16)
        rows_ref[1:tr + 1, :] = act(xc_ref[0]).astype(jnp.bfloat16)
        rows_ref[tr + 1:tr + 2, :] = dn.astype(jnp.bfloat16)

        # 3x3 conv as 3 row-shifted banded matmuls (f32 accumulation).  The
        # W taps / W padding live inside the banded weights, so no im2col
        # patches, no lane concat, no padded-image scratch.
        acc = jnp.dot(rows_ref[0:tr, :], b_ref[0],
                      preferred_element_type=jnp.float32)
        acc = acc + jnp.dot(rows_ref[1:tr + 1, :], b_ref[1],
                            preferred_element_type=jnp.float32)
        acc = acc + jnp.dot(rows_ref[2:tr + 2, :], b_ref[2],
                            preferred_element_type=jnp.float32)

        y_ref[0] = acc.astype(y_ref.dtype)

        # Phase 1 of two-phase BN: per-tile, per-lane partial sum / sumsq
        # (reduced over W and tiles on the host).
        s = jnp.sum(acc, axis=0, keepdims=True)
        ss = jnp.sum(acc * acc, axis=0, keepdims=True)
        st_ref[0, 0] = jnp.concatenate(
            [s, ss, jnp.zeros((6, s.shape[-1]), jnp.float32)], axis=0)

    return kernel


def _conv_stage(x2, banded_w, scale_t, shift_t, tr):
    """One conv stage over lane-dense input x2: (N, H, W*C) -> (y, stats)."""
    n, h, wc = x2.shape
    nh = h // tr
    rb = tr // 8
    apply_act = scale_t is not None

    c_map = lambda bn, bi: (bn, bi, 0)
    up_map = lambda bn, bi: (bn, jnp.maximum(bi * rb - 1, 0), 0)
    dn_map = lambda bn, bi: (bn, jnp.minimum((bi + 1) * rb, h // 8 - 1), 0)
    w_map = lambda bn, bi: (0, 0, 0)          # weights stay VMEM-resident
    v_map = lambda bn, bi: (0, 0)

    in_specs = [
        pl.BlockSpec((1, tr, wc), c_map),     # center rows of the tile
        pl.BlockSpec((1, 8, wc), up_map),     # 8-row block above (use last row)
        pl.BlockSpec((1, 8, wc), dn_map),     # 8-row block below (use first row)
        pl.BlockSpec((3, wc, wc), w_map),     # banded bf16 conv weights
    ]
    args = [x2, x2, x2, banded_w]
    if apply_act:
        in_specs += [pl.BlockSpec((1, wc), v_map), pl.BlockSpec((1, wc), v_map)]
        args += [scale_t, shift_t]

    out_shape = (jax.ShapeDtypeStruct((n, h, wc), jnp.float32),
                 jax.ShapeDtypeStruct((n, nh, 8, wc), jnp.float32))
    out_specs = (pl.BlockSpec((1, tr, wc), c_map),
                 pl.BlockSpec((1, 1, 8, wc), lambda bn, bi: (bn, bi, 0, 0)))

    per_step = ((tr + 16) * wc * 4            # center + halo blocks (f32)
                + 3 * wc * wc * 2             # banded weights (bf16)
                + tr * wc * 4                 # conv-output tile
                + 8 * wc * 4                  # partial-stats tile
                + (tr + 2) * wc * 2           # bf16 rows scratch
                + 2 * wc * 4)                 # scale / shift

    return pl.pallas_call(
        _make_conv_stage_kernel(tr, apply_act),
        grid=(n, nh),
        in_specs=in_specs,
        out_specs=out_specs,
        out_shape=out_shape,
        scratch_shapes=[pltpu.VMEM((tr + 2, wc), jnp.bfloat16)],
        compiler_params=pltpu.CompilerParams(
            dimension_semantics=("parallel", "parallel"),
            vmem_limit_bytes=_vmem_limit_bytes(per_step)),
    )(*args)


# ----------------------------------------------------------------------------
# epilogue kernel: BN2 affine + residual + ReLU (lane-dense elementwise)
# ----------------------------------------------------------------------------
def _epilogue_kernel(y2_ref, x_ref, sc_ref, sh_ref, o_ref):
    o_ref[0] = jnp.maximum(
        y2_ref[0] * sc_ref[...] + sh_ref[...] + x_ref[0], 0.0)


def _epilogue(y2, x2, scale_t, shift_t, tr):
    n, h, wc = x2.shape
    nh = h // tr
    c_map = lambda bn, bi: (bn, bi, 0)
    v_map = lambda bn, bi: (0, 0)
    per_step = 3 * tr * wc * 4 + 2 * wc * 4
    return pl.pallas_call(
        _epilogue_kernel,
        grid=(n, nh),
        in_specs=[pl.BlockSpec((1, tr, wc), c_map),
                  pl.BlockSpec((1, tr, wc), c_map),
                  pl.BlockSpec((1, wc), v_map),
                  pl.BlockSpec((1, wc), v_map)],
        out_specs=pl.BlockSpec((1, tr, wc), c_map),
        out_shape=jax.ShapeDtypeStruct((n, h, wc), jnp.float32),
        compiler_params=pltpu.CompilerParams(
            dimension_semantics=("parallel", "parallel"),
            vmem_limit_bytes=_vmem_limit_bytes(per_step)),
    )(y2, x2, scale_t, shift_t)


# ----------------------------------------------------------------------------
# full BasicBlock forward
# ----------------------------------------------------------------------------
def basic_block_forward(x_nchw, p):
    """BasicBlock forward. x_nchw: (N, C, H, W) float32."""
    x = jnp.transpose(x_nchw, (0, 2, 3, 1)).astype(jnp.float32)  # NCHW -> NHWC
    n, h, w, c = x.shape
    tr = _choose_row_tile(h)
    m = n * h * w
    x2 = x.reshape(n, h, w * c)  # lane-dense (W*C on lanes); free reshape

    # stage 1: conv1 + per-tile partial BN1 stats
    y1, st1 = _conv_stage(x2, p["B1"], None, None, tr)
    sc1, sh1 = _bn_scale_shift(st1, p["g1"], p["be1"], m, w, c)

    # stage 2: BN1 affine + ReLU + conv2 + per-tile partial BN2 stats
    y2, st2 = _conv_stage(y1, p["B2"], sc1, sh1, tr)
    sc2, sh2 = _bn_scale_shift(st2, p["g2"], p["be2"], m, w, c)

    # epilogue: BN2 affine + identity residual + ReLU
    out2 = _epilogue(y2, x2, sc2, sh2, tr)
    return jnp.transpose(out2.reshape(n, h, w, c), (0, 3, 1, 2))  # NHWC -> NCHW


# ----------------------------------------------------------------------------
# parameters & pure-JAX reference
# ----------------------------------------------------------------------------
def init_params(key, c, width):
    """Deterministic synthetic parameters (same shapes as nn.Conv2d / BN2d)."""
    ks = jax.random.split(key, 4)
    w1_oihw = jax.random.normal(ks[0], (c, c, 3, 3), jnp.float32) * 0.1
    b1 = jax.random.normal(ks[1], (c,), jnp.float32) * 0.1
    w2_oihw = jax.random.normal(ks[2], (c, c, 3, 3), jnp.float32) * 0.1
    b2 = jax.random.normal(ks[3], (c,), jnp.float32) * 0.1
    g1 = jnp.ones((c,), jnp.float32)   # BN affine defaults
    be1 = jnp.zeros((c,), jnp.float32)
    g2 = jnp.ones((c,), jnp.float32)
    be2 = jnp.zeros((c,), jnp.float32)

    kernel_params = {
        "B1": _banded_conv_weight(w1_oihw, width),
        "B2": _banded_conv_weight(w2_oihw, width),
        "g1": g1, "be1": be1, "g2": g2, "be2": be2,
        # conv biases are intentionally NOT passed to the kernel: training-mode
        # BatchNorm cancels them exactly (the reference keeps them and matches).
    }
    torch_params = {"w1": w1_oihw, "b1": b1, "g1": g1, "be1": be1,
                    "w2": w2_oihw, "b2": b2, "g2": g2, "be2": be2}
    return kernel_params, torch_params


def ref_forward(x_nchw, tp):
    """Pure-JAX f32 reference (NCHW, lax.conv) mirroring PyTorch semantics."""
    def conv(x, w, b):
        y = jax.lax.conv_general_dilated(
            x, w, window_strides=(1, 1), padding=((1, 1), (1, 1)),
            dimension_numbers=("NCHW", "OIHW", "NCHW"))
        return y + b[None, :, None, None]

    def bn(x, g, be):
        mean = jnp.mean(x, axis=(0, 2, 3), keepdims=True)
        var = jnp.mean((x - mean) ** 2, axis=(0, 2, 3), keepdims=True)
        xn = (x - mean) * jax.lax.rsqrt(var + _EPS)
        return xn * g[None, :, None, None] + be[None, :, None, None]

    out = jax.nn.relu(bn(conv(x_nchw, tp["w1"], tp["b1"]), tp["g1"], tp["be1"]))
    out = bn(conv(out, tp["w2"], tp["b2"]), tp["g2"], tp["be2"]) + x_nchw
    return jax.nn.relu(out)


if __name__ == "__main__":
    N, C, H, W = 2, 4, 16, 16  # in_channel == out_channel, stride=1, no downsample
    key = jax.random.PRNGKey(0)
    kx, kp = jax.random.split(key)
    x = jax.random.normal(kx, (N, C, H, W), jnp.float32)
    kernel_params, torch_params = init_params(kp, C, W)

    fwd = jax.jit(basic_block_forward)
    out = jax.block_until_ready(fwd(x, kernel_params))
    ref = jax.block_until_ready(ref_forward(x, torch_params))

    # Matmul operands are bf16 (f32 accumulation / f32 BN & residual), so
    # compare against the f32 reference at bf16-level tolerance.
    np.testing.assert_allclose(np.asarray(out), np.asarray(ref),
                               rtol=2e-2, atol=2e-2)
    assert out.shape == (N, C, H, W)
    print("KERNEL_OK")
</pallas_src>

<mosaic_0001>
module attributes {stable_mosaic.version = 11 : i64} {
  func.func @kernel(%arg0: i32, %arg1: i32, %arg2: memref<1x8x64xf32, #tpu.memory_space<vmem>>, %arg3: memref<1x8x64xf32, #tpu.memory_space<vmem>>, %arg4: memref<1x8x64xf32, #tpu.memory_space<vmem>>, %arg5: memref<3x64x64xbf16, #tpu.memory_space<vmem>>, %arg6: memref<1x8x64xf32, #tpu.memory_space<vmem>>, %arg7: memref<1x1x8x64xf32, #tpu.memory_space<vmem>>, %arg8: memref<10x64xbf16, #tpu.memory_space<vmem>>) attributes {dimension_semantics = [#tpu.dimension_semantics<parallel>, #tpu.dimension_semantics<parallel>], iteration_bounds = array<i64: 2, 2>, scalar_prefetch = 0 : i64, scratch_operands = 1 : i64, tpu.core_type = #tpu.core_type<tc>, window_params = [{transform_indices = @transform_0, window_bounds = array<i64: 1, 8, 64>}, {transform_indices = @transform_1, window_bounds = array<i64: 1, 8, 64>}, {transform_indices = @transform_2, window_bounds = array<i64: 1, 8, 64>}, {pipeline_mode = #tpu.pipeline_mode<synchronous>, transform_indices = @transform_3, window_bounds = array<i64: 3, 64, 64>}, {transform_indices = @transform_4, window_bounds = array<i64: 1, 8, 64>}, {transform_indices = @transform_5, window_bounds = array<i64: 1, 1, 8, 64>}]} {
    %c0_i32 = arith.constant 0 : i32
    %0 = arith.cmpi eq, %arg1, %c0_i32 : i32
    %c0 = arith.constant 0 : index
    %c7 = arith.constant 7 : index
    %c0_0 = arith.constant 0 : index
    %1 = vector.load %arg3[%c0, %c7, %c0_0] : memref<1x8x64xf32, #tpu.memory_space<vmem>>, vector<1x1x64xf32>
    %2 = vector.shape_cast %1 : vector<1x1x64xf32> to vector<1x64xf32>
    %cst = arith.constant 0.000000e+00 : f32
    %3 = vector.broadcast %cst : f32 to vector<1x64xf32>
    %4 = arith.select %0, %3, %2 : vector<1x64xf32>
    %c1_i32 = arith.constant 1 : i32
    %5 = arith.cmpi eq, %arg1, %c1_i32 : i32
    %c0_1 = arith.constant 0 : index
    %c0_2 = arith.constant 0 : index
    %c0_3 = arith.constant 0 : index
    %6 = vector.load %arg4[%c0_1, %c0_2, %c0_3] : memref<1x8x64xf32, #tpu.memory_space<vmem>>, vector<1x1x64xf32>
    %7 = vector.shape_cast %6 : vector<1x1x64xf32> to vector<1x64xf32>
    %cst_4 = arith.constant 0.000000e+00 : f32
    %8 = vector.broadcast %cst_4 : f32 to vector<1x64xf32>
    %9 = arith.select %5, %8, %7 : vector<1x64xf32>
    %10 = arith.truncf %4 : vector<1x64xf32> to vector<1x64xbf16>
    %c0_5 = arith.constant 0 : index
    %c0_6 = arith.constant 0 : index
    %11 = vector.load %arg8[%c0_5, %c0_6] : memref<10x64xbf16, #tpu.memory_space<vmem>>, vector<1x64xbf16>
    tpu.vector_store %arg8[%c0_5, %c0_6], %10 {strides = array<i32>} : memref<10x64xbf16, #tpu.memory_space<vmem>>, vector<1x64xbf16>,
    %c0_7 = arith.constant 0 : index
    %c0_8 = arith.constant 0 : index
    %c0_9 = arith.constant 0 : index
    %12 = vector.load %arg2[%c0_7, %c0_8, %c0_9] : memref<1x8x64xf32, #tpu.memory_space<vmem>>, vector<1x8x64xf32>
    %13 = vector.shape_cast %12 : vector<1x8x64xf32> to vector<8x64xf32>
    %14 = arith.truncf %13 : vector<8x64xf32> to vector<8x64xbf16>
    %c1 = arith.constant 1 : index
    %c0_10 = arith.constant 0 : index
    %15 = vector.load %arg8[%c1, %c0_10] : memref<10x64xbf16, #tpu.memory_space<vmem>>, vector<8x64xbf16>
    tpu.vector_store %arg8[%c1, %c0_10], %14 {strides = array<i32>} : memref<10x64xbf16, #tpu.memory_space<vmem>>, vector<8x64xbf16>,
    %16 = arith.truncf %9 : vector<1x64xf32> to vector<1x64xbf16>
    %c9 = arith.constant 9 : index
    %c0_11 = arith.constant 0 : index
    %17 = vector.load %arg8[%c9, %c0_11] : memref<10x64xbf16, #tpu.memory_space<vmem>>, vector<1x64xbf16>
    tpu.vector_store %arg8[%c9, %c0_11], %16 {strides = array<i32>} : memref<10x64xbf16, #tpu.memory_space<vmem>>, vector<1x64xbf16>,
    %c0_12 = arith.constant 0 : index
    %c0_13 = arith.constant 0 : index
    %18 = vector.load %arg8[%c0_12, %c0_13] : memref<10x64xbf16, #tpu.memory_space<vmem>>, vector<8x64xbf16>
    %c0_14 = arith.constant 0 : index
    %c0_15 = arith.constant 0 : index
    %c0_16 = arith.constant 0 : index
    %19 = vector.load %arg5[%c0_14, %c0_15, %c0_16] : memref<3x64x64xbf16, #tpu.memory_space<vmem>>, vector<1x64x64xbf16>
    %20 = vector.shape_cast %19 : vector<1x64x64xbf16> to vector<64x64xbf16>
    %cst_17 = arith.constant dense<0.000000e+00> : vector<8x64xf32>
    %21 = tpu.matmul %18, %20, %cst_17 {dimension_numbers = #tpu.dot_dimension_numbers<[1], [0], [0], [1], [0, 0, 1, 1], [], []>} : vector<8x64xbf16>, vector<64x64xbf16>, vector<8x64xf32> -> vector<8x64xf32>
    %c1_18 = arith.constant 1 : index
    %c0_19 = arith.constant 0 : index
    %22 = vector.load %arg8[%c1_18, %c0_19] : memref<10x64xbf16, #tpu.memory_space<vmem>>, vector<8x64xbf16>
    %c1_20 = arith.constant 1 : index
    %c0_21 = arith.constant 0 : index
    %c0_22 = arith.constant 0 : index
    %23 = vector.load %arg5[%c1_20, %c0_21, %c0_22] : memref<3x64x64xbf16, #tpu.memory_space<vmem>>, vector<1x64x64xbf16>
    %24 = vector.shape_cast %23 : vector<1x64x64xbf16> to vector<64x64xbf16>
    %cst_23 = arith.constant dense<0.000000e+00> : vector<8x64xf32>
    %25 = tpu.matmul %22, %24, %cst_23 {dimension_numbers = #tpu.dot_dimension_numbers<[1], [0], [0], [1], [0, 0, 1, 1], [], []>} : vector<8x64xbf16>, vector<64x64xbf16>, vector<8x64xf32> -> vector<8x64xf32>
    %26 = arith.addf %21, %25 : vector<8x64xf32>
    %c2 = arith.constant 2 : index
    %c0_24 = arith.constant 0 : index
    %27 = vector.load %arg8[%c2, %c0_24] : memref<10x64xbf16, #tpu.memory_space<vmem>>, vector<8x64xbf16>
    %c2_25 = arith.constant 2 : index
    %c0_26 = arith.constant 0 : index
    %c0_27 = arith.constant 0 : index
    %28 = vector.load %arg5[%c2_25, %c0_26, %c0_27] : memref<3x64x64xbf16, #tpu.memory_space<vmem>>, vector<1x64x64xbf16>
    %29 = vector.shape_cast %28 : vector<1x64x64xbf16> to vector<64x64xbf16>
    %cst_28 = arith.constant dense<0.000000e+00> : vector<8x64xf32>
    %30 = tpu.matmul %27, %29, %cst_28 {dimension_numbers = #tpu.dot_dimension_numbers<[1], [0], [0], [1], [0, 0, 1, 1], [], []>} : vector<8x64xbf16>, vector<64x64xbf16>, vector<8x64xf32> -> vector<8x64xf32>
    %31 = arith.addf %26, %30 : vector<8x64xf32>
    %c0_29 = arith.constant 0 : index
    %c0_30 = arith.constant 0 : index
    %c0_31 = arith.constant 0 : index
    %32 = vector.load %arg6[%c0_29, %c0_30, %c0_31] : memref<1x8x64xf32, #tpu.memory_space<vmem>>, vector<1x8x64xf32>
    %33 = vector.shape_cast %32 : vector<1x8x64xf32> to vector<8x64xf32>
    %34 = vector.shape_cast %31 : vector<8x64xf32> to vector<1x8x64xf32>
    tpu.vector_store %arg6[%c0_29, %c0_30, %c0_31], %34 {strides = array<i32>} : memref<1x8x64xf32, #tpu.memory_space<vmem>>, vector<1x8x64xf32>,
    %cst_32 = arith.constant dense<0.000000e+00> : vector<64xf32>
    %35 = vector.multi_reduction <add>, %31, %cst_32 [0] : vector<8x64xf32> to vector<64xf32>
    %36 = vector.shape_cast %35 : vector<64xf32> to vector<1x64xf32>
    %37 = arith.mulf %31, %31 : vector<8x64xf32>
    %cst_33 = arith.constant dense<0.000000e+00> : vector<64xf32>
    %38 = vector.multi_reduction <add>, %37, %cst_33 [0] : vector<8x64xf32> to vector<64xf32>
    %39 = vector.shape_cast %38 : vector<64xf32> to vector<1x64xf32>
    %cst_34 = arith.constant 0.000000e+00 : f32
    %40 = vector.broadcast %cst_34 : f32 to vector<6x64xf32>
    %41 = tpu.concatenate %36, %39, %40 in 0 : vector<1x64xf32>, vector<1x64xf32>, vector<6x64xf32> -> vector<8x64xf32>
    %c0_35 = arith.constant 0 : index
    %c0_36 = arith.constant 0 : index
    %c0_37 = arith.constant 0 : index
    %c0_38 = arith.constant 0 : index
    %42 = vector.load %arg7[%c0_35, %c0_36, %c0_37, %c0_38] : memref<1x1x8x64xf32, #tpu.memory_space<vmem>>, vector<1x1x8x64xf32>
    %43 = vector.shape_cast %42 : vector<1x1x8x64xf32> to vector<8x64xf32>
    %44 = vector.shape_cast %41 : vector<8x64xf32> to vector<1x1x8x64xf32>
    tpu.vector_store %arg7[%c0_35, %c0_36, %c0_37, %c0_38], %44 {strides = array<i32>} : memref<1x1x8x64xf32, #tpu.memory_space<vmem>>, vector<1x1x8x64xf32>,
    return
  }
  func.func @transform_0(%arg0: i32, %arg1: i32) -> (i32, i32, i32) {
    %c0_i32 = arith.constant 0 : i32
    %c0_i32_0 = arith.constant 0 : i32
    return %arg0, %arg1, %c0_i32 : i32, i32, i32
  }
  func.func @transform_1(%arg0: i32, %arg1: i32) -> (i32, i32, i32) {
    %c1_i32 = arith.constant 1 : i32
    %0 = arith.muli %arg1, %c1_i32 : i32
    %c1_i32_0 = arith.constant 1 : i32
    %1 = arith.subi %0, %c1_i32_0 : i32
    %c0_i32 = arith.constant 0 : i32
    %2 = arith.maxsi %1, %c0_i32 : i32
    %c0_i32_1 = arith.constant 0 : i32
    %c0_i32_2 = arith.constant 0 : i32
    return %arg0, %2, %c0_i32_1 : i32, i32, i32
  }
  func.func @transform_2(%arg0: i32, %arg1: i32) -> (i32, i32, i32) {
    %c1_i32 = arith.constant 1 : i32
    %0 = arith.addi %arg1, %c1_i32 : i32
    %c1_i32_0 = arith.constant 1 : i32
    %1 = arith.muli %0, %c1_i32_0 : i32
    %c1_i32_1 = arith.constant 1 : i32
    %2 = arith.minsi %1, %c1_i32_1 : i32
    %c0_i32 = arith.constant 0 : i32
    %c0_i32_2 = arith.constant 0 : i32
    return %arg0, %2, %c0_i32 : i32, i32, i32
  }
  func.func @transform_3(%arg0: i32, %arg1: i32) -> (i32, i32, i32) {
    %c0_i32 = arith.constant 0 : i32
    %c0_i32_0 = arith.constant 0 : i32
    %c0_i32_1 = arith.constant 0 : i32
    %c0_i32_2 = arith.constant 0 : i32
    return %c0_i32, %c0_i32_0, %c0_i32_1 : i32, i32, i32
  }
  func.func @transform_4(%arg0: i32, %arg1: i32) -> (i32, i32, i32) {
    %c0_i32 = arith.constant 0 : i32
    %c0_i32_0 = arith.constant 0 : i32
    return %arg0, %arg1, %c0_i32 : i32, i32, i32
  }
  func.func @transform_5(%arg0: i32, %arg1: i32) -> (i32, i32, i32, i32) {
    %c0_i32 = arith.constant 0 : i32
    %c0_i32_0 = arith.constant 0 : i32
    %c0_i32_1 = arith.constant 0 : i32
    return %arg0, %arg1, %c0_i32, %c0_i32_0 : i32, i32, i32, i32
  }
}

module attributes {stable_mosaic.version = 11 : i64} {
  func.func @_epilogue_kernel(%arg0: i32, %arg1: i32, %arg2: memref<1x8x64xf32, #tpu.memory_space<vmem>>, %arg3: memref<1x8x64xf32, #tpu.memory_space<vmem>>, %arg4: memref<1x64xf32, #tpu.memory_space<vmem>>, %arg5: memref<1x64xf32, #tpu.memory_space<vmem>>, %arg6: memref<1x8x64xf32, #tpu.memory_space<vmem>>) attributes {dimension_semantics = [#tpu.dimension_semantics<parallel>, #tpu.dimension_semantics<parallel>], iteration_bounds = array<i64: 2, 2>, scalar_prefetch = 0 : i64, scratch_operands = 0 : i64, tpu.core_type = #tpu.core_type<tc>, window_params = [{transform_indices = @transform_0, window_bounds = array<i64: 1, 8, 64>}, {transform_indices = @transform_1, window_bounds = array<i64: 1, 8, 64>}, {pipeline_mode = #tpu.pipeline_mode<synchronous>, transform_indices = @transform_2, window_bounds = array<i64: 1, 64>}, {pipeline_mode = #tpu.pipeline_mode<synchronous>, transform_indices = @transform_3, window_bounds = array<i64: 1, 64>}, {transform_indices = @transform_4, window_bounds = array<i64: 1, 8, 64>}]} {
    %c0 = arith.constant 0 : index
    %c0_0 = arith.constant 0 : index
    %c0_1 = arith.constant 0 : index
    %0 = vector.load %arg2[%c0, %c0_0, %c0_1] : memref<1x8x64xf32, #tpu.memory_space<vmem>>, vector<1x8x64xf32>
    %1 = vector.shape_cast %0 : vector<1x8x64xf32> to vector<8x64xf32>
    %c0_2 = arith.constant 0 : index
    %c0_3 = arith.constant 0 : index
    %2 = vector.load %arg4[%c0_2, %c0_3] : memref<1x64xf32, #tpu.memory_space<vmem>>, vector<1x64xf32>
    %3 = vector.broadcast %2 : vector<1x64xf32> to vector<8x64xf32>
    %4 = arith.mulf %1, %3 : vector<8x64xf32>
    %c0_4 = arith.constant 0 : index
    %c0_5 = arith.constant 0 : index
    %5 = vector.load %arg5[%c0_4, %c0_5] : memref<1x64xf32, #tpu.memory_space<vmem>>, vector<1x64xf32>
    %6 = vector.broadcast %5 : vector<1x64xf32> to vector<8x64xf32>
    %7 = arith.addf %4, %6 : vector<8x64xf32>
    %c0_6 = arith.constant 0 : index
    %c0_7 = arith.constant 0 : index
    %c0_8 = arith.constant 0 : index
    %8 = vector.load %arg3[%c0_6, %c0_7, %c0_8] : memref<1x8x64xf32, #tpu.memory_space<vmem>>, vector<1x8x64xf32>
    %9 = vector.shape_cast %8 : vector<1x8x64xf32> to vector<8x64xf32>
    %10 = arith.addf %7, %9 : vector<8x64xf32>
    %cst = arith.constant 0.000000e+00 : f32
    %11 = vector.broadcast %cst : f32 to vector<8x64xf32>
    %12 = arith.maximumf %10, %11 : vector<8x64xf32>
    %c0_9 = arith.constant 0 : index
    %c0_10 = arith.constant 0 : index
    %c0_11 = arith.constant 0 : index
    %13 = vector.load %arg6[%c0_9, %c0_10, %c0_11] : memref<1x8x64xf32, #tpu.memory_space<vmem>>, vector<1x8x64xf32>
    %14 = vector.shape_cast %13 : vector<1x8x64xf32> to vector<8x64xf32>
    %15 = vector.shape_cast %12 : vector<8x64xf32> to vector<1x8x64xf32>
    tpu.vector_store %arg6[%c0_9, %c0_10, %c0_11], %15 {strides = array<i32>} : memref<1x8x64xf32, #tpu.memory_space<vmem>>, vector<1x8x64xf32>,
    return
  }
  func.func @transform_0(%arg0: i32, %arg1: i32) -> (i32, i32, i32) {
    %c0_i32 = arith.constant 0 : i32
    %c0_i32_0 = arith.constant 0 : i32
    return %arg0, %arg1, %c0_i32 : i32, i32, i32
  }
  func.func @transform_1(%arg0: i32, %arg1: i32) -> (i32, i32, i32) {
    %c0_i32 = arith.constant 0 : i32
    %c0_i32_0 = arith.constant 0 : i32
    return %arg0, %arg1, %c0_i32 : i32, i32, i32
  }
  func.func @transform_2(%arg0: i32, %arg1: i32) -> (i32, i32) {
    %c0_i32 = arith.constant 0 : i32
    %c0_i32_0 = arith.constant 0 : i32
    %c0_i32_1 = arith.constant 0 : i32
    return %c0_i32, %c0_i32_0 : i32, i32
  }
  func.func @transform_3(%arg0: i32, %arg1: i32) -> (i32, i32) {
    %c0_i32 = arith.constant 0 : i32
    %c0_i32_0 = arith.constant 0 : i32
    %c0_i32_1 = arith.constant 0 : i32
    return %c0_i32, %c0_i32_0 : i32, i32
  }
  func.func @transform_4(%arg0: i32, %arg1: i32) -> (i32, i32, i32) {
    %c0_i32 = arith.constant 0 : i32
    %c0_i32_0 = arith.constant 0 : i32
    return %arg0, %arg1, %c0_i32 : i32, i32, i32
  }
}

module attributes {stable_mosaic.version = 11 : i64} {
  func.func @kernel(%arg0: i32, %arg1: i32, %arg2: memref<1x8x64xf32, #tpu.memory_space<vmem>>, %arg3: memref<1x8x64xf32, #tpu.memory_space<vmem>>, %arg4: memref<1x8x64xf32, #tpu.memory_space<vmem>>, %arg5: memref<3x64x64xbf16, #tpu.memory_space<vmem>>, %arg6: memref<1x64xf32, #tpu.memory_space<vmem>>, %arg7: memref<1x64xf32, #tpu.memory_space<vmem>>, %arg8: memref<1x8x64xf32, #tpu.memory_space<vmem>>, %arg9: memref<1x1x8x64xf32, #tpu.memory_space<vmem>>, %arg10: memref<10x64xbf16, #tpu.memory_space<vmem>>) attributes {dimension_semantics = [#tpu.dimension_semantics<parallel>, #tpu.dimension_semantics<parallel>], iteration_bounds = array<i64: 2, 2>, scalar_prefetch = 0 : i64, scratch_operands = 1 : i64, tpu.core_type = #tpu.core_type<tc>, window_params = [{transform_indices = @transform_0, window_bounds = array<i64: 1, 8, 64>}, {transform_indices = @transform_1, window_bounds = array<i64: 1, 8, 64>}, {transform_indices = @transform_2, window_bounds = array<i64: 1, 8, 64>}, {pipeline_mode = #tpu.pipeline_mode<synchronous>, transform_indices = @transform_3, window_bounds = array<i64: 3, 64, 64>}, {pipeline_mode = #tpu.pipeline_mode<synchronous>, transform_indices = @transform_4, window_bounds = array<i64: 1, 64>}, {pipeline_mode = #tpu.pipeline_mode<synchronous>, transform_indices = @transform_5, window_bounds = array<i64: 1, 64>}, {transform_indices = @transform_6, window_bounds = array<i64: 1, 8, 64>}, {transform_indices = @transform_7, window_bounds = array<i64: 1, 1, 8, 64>}]} {
    %c0_i32 = arith.constant 0 : i32
    %0 = arith.cmpi eq, %arg1, %c0_i32 : i32
    %c0 = arith.constant 0 : index
    %c7 = arith.constant 7 : index
    %c0_0 = arith.constant 0 : index
    %1 = vector.load %arg3[%c0, %c7, %c0_0] : memref<1x8x64xf32, #tpu.memory_space<vmem>>, vector<1x1x64xf32>
    %2 = vector.shape_cast %1 : vector<1x1x64xf32> to vector<1x64xf32>
    %c0_1 = arith.constant 0 : index
    %c0_2 = arith.constant 0 : index
    %3 = vector.load %arg6[%c0_1, %c0_2] : memref<1x64xf32, #tpu.memory_space<vmem>>, vector<1x64xf32>
    %4 = arith.mulf %2, %3 : vector<1x64xf32>
    %c0_3 = arith.constant 0 : index
    %c0_4 = arith.constant 0 : index
    %5 = vector.load %arg7[%c0_3, %c0_4] : memref<1x64xf32, #tpu.memory_space<vmem>>, vector<1x64xf32>
    %6 = arith.addf %4, %5 : vector<1x64xf32>
    %cst = arith.constant 0.000000e+00 : f32
    %7 = vector.broadcast %cst : f32 to vector<1x64xf32>
    %8 = arith.maximumf %6, %7 : vector<1x64xf32>
    %cst_5 = arith.constant 0.000000e+00 : f32
    %9 = vector.broadcast %cst_5 : f32 to vector<1x64xf32>
    %10 = arith.select %0, %9, %8 : vector<1x64xf32>
    %c1_i32 = arith.constant 1 : i32
    %11 = arith.cmpi eq, %arg1, %c1_i32 : i32
    %c0_6 = arith.constant 0 : index
    %c0_7 = arith.constant 0 : index
    %c0_8 = arith.constant 0 : index
    %12 = vector.load %arg4[%c0_6, %c0_7, %c0_8] : memref<1x8x64xf32, #tpu.memory_space<vmem>>, vector<1x1x64xf32>
    %13 = vector.shape_cast %12 : vector<1x1x64xf32> to vector<1x64xf32>
    %c0_9 = arith.constant 0 : index
    %c0_10 = arith.constant 0 : index
    %14 = vector.load %arg6[%c0_9, %c0_10] : memref<1x64xf32, #tpu.memory_space<vmem>>, vector<1x64xf32>
    %15 = arith.mulf %13, %14 : vector<1x64xf32>
    %c0_11 = arith.constant 0 : index
    %c0_12 = arith.constant 0 : index
    %16 = vector.load %arg7[%c0_11, %c0_12] : memref<1x64xf32, #tpu.memory_space<vmem>>, vector<1x64xf32>
    %17 = arith.addf %15, %16 : vector<1x64xf32>
    %cst_13 = arith.constant 0.000000e+00 : f32
    %18 = vector.broadcast %cst_13 : f32 to vector<1x64xf32>
    %19 = arith.maximumf %17, %18 : vector<1x64xf32>
    %cst_14 = arith.constant 0.000000e+00 : f32
    %20 = vector.broadcast %cst_14 : f32 to vector<1x64xf32>
    %21 = arith.select %11, %20, %19 : vector<1x64xf32>
    %22 = arith.truncf %10 : vector<1x64xf32> to vector<1x64xbf16>
    %c0_15 = arith.constant 0 : index
    %c0_16 = arith.constant 0 : index
    %23 = vector.load %arg10[%c0_15, %c0_16] : memref<10x64xbf16, #tpu.memory_space<vmem>>, vector<1x64xbf16>
    tpu.vector_store %arg10[%c0_15, %c0_16], %22 {strides = array<i32>} : memref<10x64xbf16, #tpu.memory_space<vmem>>, vector<1x64xbf16>,
    %c0_17 = arith.constant 0 : index
    %c0_18 = arith.constant 0 : index
    %c0_19 = arith.constant 0 : index
    %24 = vector.load %arg2[%c0_17, %c0_18, %c0_19] : memref<1x8x64xf32, #tpu.memory_space<vmem>>, vector<1x8x64xf32>
    %25 = vector.shape_cast %24 : vector<1x8x64xf32> to vector<8x64xf32>
    %c0_20 = arith.constant 0 : index
    %c0_21 = arith.constant 0 : index
    %26 = vector.load %arg6[%c0_20, %c0_21] : memref<1x64xf32, #tpu.memory_space<vmem>>, vector<1x64xf32>
    %27 = vector.broadcast %26 : vector<1x64xf32> to vector<8x64xf32>
    %28 = arith.mulf %25, %27 : vector<8x64xf32>
    %c0_22 = arith.constant 0 : index
    %c0_23 = arith.constant 0 : index
    %29 = vector.load %arg7[%c0_22, %c0_23] : memref<1x64xf32, #tpu.memory_space<vmem>>, vector<1x64xf32>
    %30 = vector.broadcast %29 : vector<1x64xf32> to vector<8x64xf32>
    %31 = arith.addf %28, %30 : vector<8x64xf32>
    %cst_24 = arith.constant 0.000000e+00 : f32
    %32 = vector.broadcast %cst_24 : f32 to vector<8x64xf32>
    %33 = arith.maximumf %31, %32 : vector<8x64xf32>
    %34 = arith.truncf %33 : vector<8x64xf32> to vector<8x64xbf16>
    %c1 = arith.constant 1 : index
    %c0_25 = arith.constant 0 : index
    %35 = vector.load %arg10[%c1, %c0_25] : memref<10x64xbf16, #tpu.memory_space<vmem>>, vector<8x64xbf16>
    tpu.vector_store %arg10[%c1, %c0_25], %34 {strides = array<i32>} : memref<10x64xbf16, #tpu.memory_space<vmem>>, vector<8x64xbf16>,
    %36 = arith.truncf %21 : vector<1x64xf32> to vector<1x64xbf16>
    %c9 = arith.constant 9 : index
    %c0_26 = arith.constant 0 : index
    %37 = vector.load %arg10[%c9, %c0_26] : memref<10x64xbf16, #tpu.memory_space<vmem>>, vector<1x64xbf16>
    tpu.vector_store %arg10[%c9, %c0_26], %36 {strides = array<i32>} : memref<10x64xbf16, #tpu.memory_space<vmem>>, vector<1x64xbf16>,
    %c0_27 = arith.constant 0 : index
    %c0_28 = arith.constant 0 : index
    %38 = vector.load %arg10[%c0_27, %c0_28] : memref<10x64xbf16, #tpu.memory_space<vmem>>, vector<8x64xbf16>
    %c0_29 = arith.constant 0 : index
    %c0_30 = arith.constant 0 : index
    %c0_31 = arith.constant 0 : index
    %39 = vector.load %arg5[%c0_29, %c0_30, %c0_31] : memref<3x64x64xbf16, #tpu.memory_space<vmem>>, vector<1x64x64xbf16>
    %40 = vector.shape_cast %39 : vector<1x64x64xbf16> to vector<64x64xbf16>
    %cst_32 = arith.constant dense<0.000000e+00> : vector<8x64xf32>
    %41 = tpu.matmul %38, %40, %cst_32 {dimension_numbers = #tpu.dot_dimension_numbers<[1], [0], [0], [1], [0, 0, 1, 1], [], []>} : vector<8x64xbf16>, vector<64x64xbf16>, vector<8x64xf32> -> vector<8x64xf32>
    %c1_33 = arith.constant 1 : index
    %c0_34 = arith.constant 0 : index
    %42 = vector.load %arg10[%c1_33, %c0_34] : memref<10x64xbf16, #tpu.memory_space<vmem>>, vector<8x64xbf16>
    %c1_35 = arith.constant 1 : index
    %c0_36 = arith.constant 0 : index
    %c0_37 = arith.constant 0 : index
    %43 = vector.load %arg5[%c1_35, %c0_36, %c0_37] : memref<3x64x64xbf16, #tpu.memory_space<vmem>>, vector<1x64x64xbf16>
    %44 = vector.shape_cast %43 : vector<1x64x64xbf16> to vector<64x64xbf16>
    %cst_38 = arith.constant dense<0.000000e+00> : vector<8x64xf32>
    %45 = tpu.matmul %42, %44, %cst_38 {dimension_numbers = #tpu.dot_dimension_numbers<[1], [0], [0], [1], [0, 0, 1, 1], [], []>} : vector<8x64xbf16>, vector<64x64xbf16>, vector<8x64xf32> -> vector<8x64xf32>
    %46 = arith.addf %41, %45 : vector<8x64xf32>
    %c2 = arith.constant 2 : index
    %c0_39 = arith.constant 0 : index
    %47 = vector.load %arg10[%c2, %c0_39] : memref<10x64xbf16, #tpu.memory_space<vmem>>, vector<8x64xbf16>
    %c2_40 = arith.constant 2 : index
    %c0_41 = arith.constant 0 : index
    %c0_42 = arith.constant 0 : index
    %48 = vector.load %arg5[%c2_40, %c0_41, %c0_42] : memref<3x64x64xbf16, #tpu.memory_space<vmem>>, vector<1x64x64xbf16>
    %49 = vector.shape_cast %48 : vector<1x64x64xbf16> to vector<64x64xbf16>
    %cst_43 = arith.constant dense<0.000000e+00> : vector<8x64xf32>
    %50 = tpu.matmul %47, %49, %cst_43 {dimension_numbers = #tpu.dot_dimension_numbers<[1], [0], [0], [1], [0, 0, 1, 1], [], []>} : vector<8x64xbf16>, vector<64x64xbf16>, vector<8x64xf32> -> vector<8x64xf32>
    %51 = arith.addf %46, %50 : vector<8x64xf32>
    %c0_44 = arith.constant 0 : index
    %c0_45 = arith.constant 0 : index
    %c0_46 = arith.constant 0 : index
    %52 = vector.load %arg8[%c0_44, %c0_45, %c0_46] : memref<1x8x64xf32, #tpu.memory_space<vmem>>, vector<1x8x64xf32>
    %53 = vector.shape_cast %52 : vector<1x8x64xf32> to vector<8x64xf32>
    %54 = vector.shape_cast %51 : vector<8x64xf32> to vector<1x8x64xf32>
    tpu.vector_store %arg8[%c0_44, %c0_45, %c0_46], %54 {strides = array<i32>} : memref<1x8x64xf32, #tpu.memory_space<vmem>>, vector<1x8x64xf32>,
    %cst_47 = arith.constant dense<0.000000e+00> : vector<64xf32>
    %55 = vector.multi_reduction <add>, %51, %cst_47 [0] : vector<8x64xf32> to vector<64xf32>
    %56 = vector.shape_cast %55 : vector<64xf32> to vector<1x64xf32>
    %57 = arith.mulf %51, %51 : vector<8x64xf32>
    %cst_48 = arith.constant dense<0.000000e+00> : vector<64xf32>
    %58 = vector.multi_reduction <add>, %57, %cst_48 [0] : vector<8x64xf32> to vector<64xf32>
    %59 = vector.shape_cast %58 : vector<64xf32> to vector<1x64xf32>
    %cst_49 = arith.constant 0.000000e+00 : f32
    %60 = vector.broadcast %cst_49 : f32 to vector<6x64xf32>
    %61 = tpu.concatenate %56, %59, %60 in 0 : vector<1x64xf32>, vector<1x64xf32>, vector<6x64xf32> -> vector<8x64xf32>
    %c0_50 = arith.constant 0 : index
    %c0_51 = arith.constant 0 : index
    %c0_52 = arith.constant 0 : index
    %c0_53 = arith.constant 0 : index
    %62 = vector.load %arg9[%c0_50, %c0_51, %c0_52, %c0_53] : memref<1x1x8x64xf32, #tpu.memory_space<vmem>>, vector<1x1x8x64xf32>
    %63 = vector.shape_cast %62 : vector<1x1x8x64xf32> to vector<8x64xf32>
    %64 = vector.shape_cast %61 : vector<8x64xf32> to vector<1x1x8x64xf32>
    tpu.vector_store %arg9[%c0_50, %c0_51, %c0_52, %c0_53], %64 {strides = array<i32>} : memref<1x1x8x64xf32, #tpu.memory_space<vmem>>, vector<1x1x8x64xf32>,
    return
  }
  func.func @transform_0(%arg0: i32, %arg1: i32) -> (i32, i32, i32) {
    %c0_i32 = arith.constant 0 : i32
    %c0_i32_0 = arith.constant 0 : i32
    return %arg0, %arg1, %c0_i32 : i32, i32, i32
  }
  func.func @transform_1(%arg0: i32, %arg1: i32) -> (i32, i32, i32) {
    %c1_i32 = arith.constant 1 : i32
    %0 = arith.muli %arg1, %c1_i32 : i32
    %c1_i32_0 = arith.constant 1 : i32
    %1 = arith.subi %0, %c1_i32_0 : i32
    %c0_i32 = arith.constant 0 : i32
    %2 = arith.maxsi %1, %c0_i32 : i32
    %c0_i32_1 = arith.constant 0 : i32
    %c0_i32_2 = arith.constant 0 : i32
    return %arg0, %2, %c0_i32_1 : i32, i32, i32
  }
  func.func @transform_2(%arg0: i32, %arg1: i32) -> (i32, i32, i32) {
    %c1_i32 = arith.constant 1 : i32
    %0 = arith.addi %arg1, %c1_i32 : i32
    %c1_i32_0 = arith.constant 1 : i32
    %1 = arith.muli %0, %c1_i32_0 : i32
    %c1_i32_1 = arith.constant 1 : i32
    %2 = arith.minsi %1, %c1_i32_1 : i32
    %c0_i32 = arith.constant 0 : i32
    %c0_i32_2 = arith.constant 0 : i32
    return %arg0, %2, %c0_i32 : i32, i32, i32
  }
  func.func @transform_3(%arg0: i32, %arg1: i32) -> (i32, i32, i32) {
    %c0_i32 = arith.constant 0 : i32
    %c0_i32_0 = arith.constant 0 : i32
    %c0_i32_1 = arith.constant 0 : i32
    %c0_i32_2 = arith.constant 0 : i32
    return %c0_i32, %c0_i32_0, %c0_i32_1 : i32, i32, i32
  }
  func.func @transform_4(%arg0: i32, %arg1: i32) -> (i32, i32) {
    %c0_i32 = arith.constant 0 : i32
    %c0_i32_0 = arith.constant 0 : i32
    %c0_i32_1 = arith.constant 0 : i32
    return %c0_i32, %c0_i32_0 : i32, i32
  }
  func.func @transform_5(%arg0: i32, %arg1: i32) -> (i32, i32) {
    %c0_i32 = arith.constant 0 : i32
    %c0_i32_0 = arith.constant 0 : i32
    %c0_i32_1 = arith.constant 0 : i32
    return %c0_i32, %c0_i32_0 : i32, i32
  }
  func.func @transform_6(%arg0: i32, %arg1: i32) -> (i32, i32, i32) {
    %c0_i32 = arith.constant 0 : i32
    %c0_i32_0 = arith.constant 0 : i32
    return %arg0, %arg1, %c0_i32 : i32, i32, i32
  }
  func.func @transform_7(%arg0: i32, %arg1: i32) -> (i32, i32, i32, i32) {
    %c0_i32 = arith.constant 0 : i32
    %c0_i32_0 = arith.constant 0 : i32
    %c0_i32_1 = arith.constant 0 : i32
    return %arg0, %arg1, %c0_i32, %c0_i32_0 : i32, i32, i32, i32
  }
}

</mosaic_0001>

<llo_original>
// kernel: tile.28
$region0: #{tile.28}
  #allocation0 [shape = 's32[1]{0}', space=sflag, size = 0x4, scoped, tag = 'scoped memory for tile.28']
  %s0 = inlined_call_operand.vmem [shape: f32[4], index: 0, kind: input, shape index: {}]
  %s1 = inlined_call_operand.vmem [shape: f32[16,4], index: 1, kind: output, shape index: {}]
  // Predicated region
  $region2: #{tile.28} parent=0 // pred_check
    _
  $region3: #{tile.28} parent=0 // pred_check_branch
    %3 = sbr.rel (0) target = $region5
  $region4: #{tile.28} parent=0 // pred_region
    _
  $region5: #{tile.28} parent=0 // pred_fallthru
    _
  %v4 = vld [vmem:[%s0] ss:$0 sm:$0xff]
  %5 = vst [vmem:[%s1] sm:$0xff] %v4
  %s6 = scalar_lea.vmem %s1, 8
  %7 = vst [vmem:[%s6] sm:$0xff] %v4

// kernel: tile.29
$region0: #{tile.29}
  %s0 = inlined_call_operand.vmem [shape: f32[16,4], index: 0, kind: input, shape index: {}]
  %s1 = inlined_call_operand.vmem [shape: f32[1,64], index: 1, kind: output, shape index: {}]
  $region1: #{tile.29} parent=0
    #allocation0 [shape = 'u8[4096]{0}', space=vmem, size = 0x1000, scoped, tag = 'scoped mem for output reshape']
    %v2 = vld [vmem:[%s0] sm:$0x1]
    %vm3 = vcmask 31744
    %4 = vst.msk [vmem:[#allocation0] sm:$0x1] %vm3, %v2
    %s5 = scalar_lea.vmem %s0, 15
    %v6 = vld [vmem:[%s5] sm:$0x1]
    %7 = vrot.lane.b32.xlu0 %v6, 60
    %v8 = vpop.permute.xlu0 %7
    %vm9 = vcmask 523744
    %10 = vst.msk [vmem:[#allocation0] sm:$0x1] %vm9, %v8
    %s11 = scalar_lea.vmem %s0, 14
    %v12 = vld [vmem:[%s11] sm:$0x1]
    %13 = vrot.lane.b32.xlu0 %v12, 56
    %v14 = vpop.permute.xlu0 %13
    %vm15 = vcmask 490944
    %16 = vst.msk [vmem:[#allocation0] sm:$0x1] %vm15, %v14
    %s17 = scalar_lea.vmem %s0, 13
    %v18 = vld [vmem:[%s17] sm:$0x1]
    %19 = vrot.lane.b32.xlu0 %v18, 52
    %v20 = vpop.permute.xlu0 %19
    %vm21 = vcmask 458144
    %22 = vst.msk [vmem:[#allocation0] sm:$0x1] %vm21, %v20
    %s23 = scalar_lea.vmem %s0, 12
    %v24 = vld [vmem:[%s23] sm:$0x1]
    %25 = vrot.lane.b32.xlu0 %v24, 48
    %v26 = vpop.permute.xlu0 %25
    %vm27 = vcmask 425344
    %28 = vst.msk [vmem:[#allocation0] sm:$0x1] %vm27, %v26
    %s29 = scalar_lea.vmem %s0, 11
    %v30 = vld [vmem:[%s29] sm:$0x1]
    %31 = vrot.lane.b32.xlu0 %v30, 44
    %v32 = vpop.permute.xlu0 %31
    %vm33 = vcmask 392544
    %34 = vst.msk [vmem:[#allocation0] sm:$0x1] %vm33, %v32
    %s35 = scalar_lea.vmem %s0, 10
    %v36 = vld [vmem:[%s35] sm:$0x1]
    %37 = vrot.lane.b32.xlu0 %v36, 40
    %v38 = vpop.permute.xlu0 %37
    %vm39 = vcmask 359744
    %40 = vst.msk [vmem:[#allocation0] sm:$0x1] %vm39, %v38
    %s41 = scalar_lea.vmem %s0, 9
    %v42 = vld [vmem:[%s41] sm:$0x1]
    %43 = vrot.lane.b32.xlu0 %v42, 36
    %v44 = vpop.permute.xlu0 %43
    %vm45 = vcmask 326944
    %46 = vst.msk [vmem:[#allocation0] sm:$0x1] %vm45, %v44
    %s47 = scalar_lea.vmem %s0, 8
    %v48 = vld [vmem:[%s47] sm:$0x1]
    %49 = vrot.lane.b32.xlu0 %v48, 32
    %v50 = vpop.permute.xlu0 %49
    %vm51 = vcmask 294144
    %52 = vst.msk [vmem:[#allocation0] sm:$0x1] %vm51, %v50
    %s53 = scalar_lea.vmem %s0, 7
    %v54 = vld [vmem:[%s53] sm:$0x1]
    %55 = vrot.lane.b32.xlu0 %v54, 28
    %v56 = vpop.permute.xlu0 %55
    %vm57 = vcmask 261344
    %58 = vst.msk [vmem:[#allocation0] sm:$0x1] %vm57, %v56
    %s59 = scalar_lea.vmem %s0, 6
    %v60 = vld [vmem:[%s59] sm:$0x1]
    %61 = vrot.lane.b32.xlu0 %v60, 24
    %v62 = vpop.permute.xlu0 %61
    %vm63 = vcmask 228544
    %64 = vst.msk [vmem:[#allocation0] sm:$0x1] %vm63, %v62
    %s65 = scalar_lea.vmem %s0, 5
    %v66 = vld [vmem:[%s65] sm:$0x1]
    %67 = vrot.lane.b32.xlu0 %v66, 20
    %v68 = vpop.permute.xlu0 %67
    %vm69 = vcmask 195744
    %70 = vst.msk [vmem:[#allocation0] sm:$0x1] %vm69, %v68
    %s71 = scalar_lea.vmem %s0, 4
    %v72 = vld [vmem:[%s71] sm:$0x1]
    %73 = vrot.lane.b32.xlu0 %v72, 16
    %v74 = vpop.permute.xlu0 %73
    %vm75 = vcmask 162944
    %76 = vst.msk [vmem:[#allocation0] sm:$0x1] %vm75, %v74
    %s77 = scalar_lea.vmem %s0, 3
    %v78 = vld [vmem:[%s77] sm:$0x1]
    %79 = vrot.lane.b32.xlu0 %v78, 12
    %v80 = vpop.permute.xlu0 %79
    %vm81 = vcmask 130144
    %82 = vst.msk [vmem:[#allocation0] sm:$0x1] %vm81, %v80
    %s83 = scalar_lea.vmem %s0, 2
    %v84 = vld [vmem:[%s83] sm:$0x1]
    %85 = vrot.lane.b32.xlu0 %v84, 8
    %v86 = vpop.permute.xlu0 %85
    %vm87 = vcmask 97344
    %88 = vst.msk [vmem:[#allocation0] sm:$0x1] %vm87, %v86
    %s89 = scalar_lea.vmem %s0, 1
    %v90 = vld [vmem:[%s89] sm:$0x1]
    %91 = vrot.lane.b32.xlu0 %v90, 4
    %v92 = vpop.permute.xlu0 %91
    %vm93 = vcmask 64544
    %94 = vst.msk [vmem:[#allocation0] sm:$0x1] %vm93, %v92
    %s96 = ssub.s32 2, 1
    %v97 = vld [vmem:[#allocation0] sm:%s96]
    %s99 = ssub.s32 2, 1
    %100 = vst [vmem:[%s1] sm:%s99] %v97

// kernel: basic_block_forward.5
$region0: #{basic_block_forward.5}
  #allocation0 [shape = 'u32[]', space=smem, size = 0x4, offset = 0x4, fixed_abs, tag = 'smem constant byte address 0x4 - core index']
  #allocation1 [shape = 'u32[72,128]{1,0:T(1,128)}', space=vmem, size = 0x9000, scoped, tag = 'internal scratch']
  %s0 = inlined_call_operand.vmem [shape: f32[2,16,64], index: 0, kind: input, shape index: {}]
  %s1 = inlined_call_operand.vmem [shape: f32[2,16,64], index: 1, kind: input, shape index: {}]
  %s2 = inlined_call_operand.vmem [shape: f32[1,64], index: 2, kind: input, shape index: {}]
  %s3 = inlined_call_operand.vmem [shape: f32[1,64], index: 3, kind: input, shape index: {}]
  %s4 = inlined_call_operand.vmem [shape: f32[2,16,64], index: 4, kind: output, shape index: {}]
  %s5 = sld [smem:[#allocation0]]
  $region49: #{basic_block_forward.5} parent=0
    _
  %s7 = ssub.s32 1, %s5
  %s8 = scalar_select 0, %s7, %s5
  loop: start=0, step=1, limit=6
  $region2: #{basic_block_forward.5} parent=0 // loop_pre_header
    _
  $region3: #{basic_block_forward.5} parent=0 // loop_header
    %s10 = sphi 0, %s14
    %p11 = scmp.ge.s32.totalorder %s10, 6
    %s17 = sphi 0, %s29
    %s18 = sphi 0, %s25
    %s19 = sphi 0, %s17
    %s20 = sphi 0, %s18
    %s21 = sphi 0, %s19
    %s22 = sphi 0, %s20
    %s34 = sphi 0, %s36
    %s37 = sphi 0, %s34
    %s38 = sphi 0, %s37
    %s54 = sphi 0, %s38
    %s62 = sphi 0, %s64
    %s65 = sphi 0, %s62
    %s66 = sphi 0, %s65
    %s82 = sphi 0, %s66
    %s86 = sphi 0, %s86
    %s88 = sphi 0, %s86
    %s89 = sphi 0, %s88
    %s103 = sphi 0, %s89
    %s107 = sphi 0, %s107
    %s109 = sphi 0, %s107
    %s110 = sphi 0, %s109
    %s124 = sphi 0, %s110
    %s132 = sphi 0, %s134
    %s135 = sphi 0, %s132
    %s136 = sphi 0, %s135
    %s152 = sphi 0, %s136
  $region4: #{basic_block_forward.5} parent=0 // loop_header_branch
    %13 = sbr.rel (%p11) target = $region8
  $region5: #{basic_block_forward.5} parent=0 // loop_body
    %s15 = ssub.s32 %s10, 1
    %s16 = ssub.s32 %s10, 2
    %s23 = sadd.s32 1, %s18
    %p24 = scmp.ge.s32.totalorder %s23, 2
    %s25 = scalar_select %p24, 0, %s23
    %s26 = sadd.s32 1, %s17
    %s27 = scalar_select %p24, %s26, %s17
    %p28 = scmp.ge.s32.totalorder %s27, 2
    %s29 = scalar_select %p28, 0, %s27
    %s30 = ssub.s32 %s17, %s29
    %s31 = ssub.s32 %s18, %s25
    %s32 = sor.u32 %s30, %s31
    %p33 = scmp.eq.s32.totalorder %s32, 0
    %s35 = sadd.s32 %s34, 1
    %s36 = scalar_select %p33, %s34, %s35
    %p39 = pneg %p33
    %p40 = scmp.eq.s32.totalorder %s10, 3
    %p41 = por %p39, %p40
    %p42 = scmp.ne.s32.totalorder %s34, %s37
    %p43 = scmp.eq.s32.totalorder %s10, 0
    %p44 = por %p42, %p43
    %p45 = scmp.ne.s32.totalorder %s34, %s37
    %p46 = scmp.eq.s32.totalorder %s15, 3
    %p47 = por %p45, %p46
    %p48 = scmp.ne.s32.totalorder %s37, %s38
    %p49 = scmp.eq.s32.totalorder %s15, 0
    %p50 = por %p48, %p49
    %p51 = scmp.ne.s32.totalorder %s37, %s38
    %p52 = scmp.eq.s32.totalorder %s16, 3
    %p53 = por %p51, %p52
    %p55 = scmp.ne.s32.totalorder %s38, %s54
    %p56 = scmp.eq.s32.totalorder %s16, 0
    %p57 = por %p55, %p56
    %s58 = ssub.s32 %s17, %s29
    %s59 = ssub.s32 %s18, %s25
    %s60 = sor.u32 %s58, %s59
    %p61 = scmp.eq.s32.totalorder %s60, 0
    %s63 = sadd.s32 %s62, 1
    %s64 = scalar_select %p61, %s62, %s63
    %p67 = pneg %p61
    %p68 = scmp.eq.s32.totalorder %s10, 3
    %p69 = por %p67, %p68
    %p70 = scmp.ne.s32.totalorder %s62, %s65
    %p71 = scmp.eq.s32.totalorder %s10, 0
    %p72 = por %p70, %p71
    %p73 = scmp.ne.s32.totalorder %s62, %s65
    %p74 = scmp.eq.s32.totalorder %s15, 3
    %p75 = por %p73, %p74
    %p76 = scmp.ne.s32.totalorder %s65, %s66
    %p77 = scmp.eq.s32.totalorder %s15, 0
    %p78 = por %p76, %p77
    %p79 = scmp.ne.s32.totalorder %s65, %s66
    %p80 = scmp.eq.s32.totalorder %s16, 3
    %p81 = por %p79, %p80
    %p83 = scmp.ne.s32.totalorder %s66, %s82
    %p84 = scmp.eq.s32.totalorder %s16, 0
    %p85 = por %p83, %p84
    %s87 = sadd.s32 %s86, 1
    %p90 = scmp.eq.s32.totalorder %s10, 3
    %p91 = scmp.ne.s32.totalorder %s86, %s88
    %p92 = scmp.eq.s32.totalorder %s10, 0
    %p93 = por %p91, %p92
    %p94 = scmp.ne.s32.totalorder %s86, %s88
    %p95 = scmp.eq.s32.totalorder %s15, 3
    %p96 = por %p94, %p95
    %p97 = scmp.ne.s32.totalorder %s88, %s89
    %p98 = scmp.eq.s32.totalorder %s15, 0
    %p99 = por %p97, %p98
    %p100 = scmp.ne.s32.totalorder %s88, %s89
    %p101 = scmp.eq.s32.totalorder %s16, 3
    %p102 = por %p100, %p101
    %p104 = scmp.ne.s32.totalorder %s89, %s103
    %p105 = scmp.eq.s32.totalorder %s16, 0
    %p106 = por %p104, %p105
    %s108 = sadd.s32 %s107, 1
    %p111 = scmp.eq.s32.totalorder %s10, 3
    %p112 = scmp.ne.s32.totalorder %s107, %s109
    %p113 = scmp.eq.s32.totalorder %s10, 0
    %p114 = por %p112, %p113
    %p115 = scmp.ne.s32.totalorder %s107, %s109
    %p116 = scmp.eq.s32.totalorder %s15, 3
    %p117 = por %p115, %p116
    %p118 = scmp.ne.s32.totalorder %s109, %s110
    %p119 = scmp.eq.s32.totalorder %s15, 0
    %p120 = por %p118, %p119
    %p121 = scmp.ne.s32.totalorder %s109, %s110
    %p122 = scmp.eq.s32.totalorder %s16, 3
    %p123 = por %p121, %p122
    %p125 = scmp.ne.s32.totalorder %s110, %s124
    %p126 = scmp.eq.s32.totalorder %s16, 0
    %p127 = por %p125, %p126
    %s128 = ssub.s32 %s17, %s29
    %s129 = ssub.s32 %s18, %s25
    %s130 = sor.u32 %s128, %s129
    %p131 = scmp.eq.s32.totalorder %s130, 0
    %s133 = sadd.s32 %s132, 1
    %s134 = scalar_select %p131, %s132, %s133
    %p137 = pneg %p131
    %p138 = scmp.eq.s32.totalorder %s10, 3
    %p139 = por %p137, %p138
    %p140 = scmp.ne.s32.totalorder %s132, %s135
    %p141 = scmp.eq.s32.totalorder %s10, 0
    %p142 = por %p140, %p141
    %p143 = scmp.ne.s32.totalorder %s132, %s135
    %p144 = scmp.eq.s32.totalorder %s15, 3
    %p145 = por %p143, %p144
    %p146 = scmp.ne.s32.totalorder %s135, %s136
    %p147 = scmp.eq.s32.totalorder %s15, 0
    %p148 = por %p146, %p147
    %p149 = scmp.ne.s32.totalorder %s135, %s136
    %p150 = scmp.eq.s32.totalorder %s16, 3
    %p151 = por %p149, %p150
    %p153 = scmp.ne.s32.totalorder %s136, %s152
    %p154 = scmp.eq.s32.totalorder %s16, 0
    %p155 = por %p153, %p154
    %p156 = scmp.le.s32.totalorder 1, %s10
    %p157 = scmp.lt.s32.totalorder %s10, 5
    %p158 = pnand %p156, %p157
    %p159 = pneg %p158
    // Predicated region
    $region9: #{basic_block_forward.5} parent=5 // pred_check
      _
    $region10: #{basic_block_forward.5} parent=5 // pred_check_branch
      %161 = sbr.rel (%p158) target = $region12
    $region11: #{basic_block_forward.5} parent=5 // pred_region
      %s162 = ssub.s32 %s10, 1
      // Predicated region
      $region13: #{basic_block_forward.5} parent=11 // pred_check
        %p163 = pneg %p99
      $region14: #{basic_block_forward.5} parent=11 // pred_check_branch
        %165 = sbr.rel (%p163) target = $region16
      $region15: #{basic_block_forward.5} parent=11 // pred_region
        _
      $region16: #{basic_block_forward.5} parent=11 // pred_fallthru
        _
      // Predicated region
      $region17: #{basic_block_forward.5} parent=11 // pred_check
        %p166 = pneg %p120
      $region18: #{basic_block_forward.5} parent=11 // pred_check_branch
        %168 = sbr.rel (%p166) target = $region20
      $region19: #{basic_block_forward.5} parent=11 // pred_region
        _
      $region20: #{basic_block_forward.5} parent=11 // pred_fallthru
        _
    $region12: #{basic_block_forward.5} parent=5 // pred_fallthru
      _
    %p169 = scmp.lt.s32.totalorder %s10, 4
    // Predicated region
    $region21: #{basic_block_forward.5} parent=5 // pred_check
      %p170 = pneg %p169
    $region22: #{basic_block_forward.5} parent=5 // pred_check_branch
      %172 = sbr.rel (%p170) target = $region24
    $region23: #{basic_block_forward.5} parent=5 // pred_region
      // Predicated region
      $region25: #{basic_block_forward.5} parent=23 // pred_check
        %p173 = pneg %p44
      $region26: #{basic_block_forward.5} parent=23 // pred_check_branch
        %175 = sbr.rel (%p173) target = $region28
      $region27: #{basic_block_forward.5} parent=23 // pred_region
        %p176 = scmp.lt.s32.totalorder %s17, 1
        %s177 = scalar_select %p176, %s17, 1
        %p178 = scmp.lt.s32.totalorder %s18, 1
        %s179 = scalar_select %p178, %s18, 1
        %s180 = smul.addr %s177, 2
        %s181 = sadd.s32 %s179, %s180
        %s182 = smul.addr %s181, 8
        %s183 = scalar_lea.vmem %s0, %s182
      $region28: #{basic_block_forward.5} parent=23 // pred_fallthru
        _
      // Predicated region
      $region29: #{basic_block_forward.5} parent=23 // pred_check
        %p184 = pneg %p72
      $region30: #{basic_block_forward.5} parent=23 // pred_check_branch
        %186 = sbr.rel (%p184) target = $region32
      $region31: #{basic_block_forward.5} parent=23 // pred_region
        %p187 = scmp.lt.s32.totalorder %s17, 1
        %s188 = scalar_select %p187, %s17, 1
        %p189 = scmp.lt.s32.totalorder %s18, 1
        %s190 = scalar_select %p189, %s18, 1
        %s191 = smul.addr %s188, 2
        %s192 = sadd.s32 %s190, %s191
        %s193 = smul.addr %s192, 8
        %s194 = scalar_lea.vmem %s1, %s193
      $region32: #{basic_block_forward.5} parent=23 // pred_fallthru
        _
    $region24: #{basic_block_forward.5} parent=5 // pred_fallthru
      _
    %p195 = scmp.le.s32.totalorder 1, %s10
    %p196 = scmp.lt.s32.totalorder %s10, 5
    %p197 = pnand %p195, %p196
    %p198 = pneg %p197
    // Predicated region
    $region33: #{basic_block_forward.5} parent=5 // pred_check
      _
    $region34: #{basic_block_forward.5} parent=5 // pred_check_branch
      %200 = sbr.rel (%p197) target = $region36
    $region35: #{basic_block_forward.5} parent=5 // pred_region
      %s201 = ssub.s32 %s10, 1
      %p202 = scmp.lt.s32.totalorder %s19, 1
      %s203 = scalar_select %p202, %s19, 1
      %p204 = scmp.lt.s32.totalorder %s20, 1
      %s205 = scalar_select %p204, %s20, 1
      %s206 = smul.addr %s203, 2
      %s207 = sadd.s32 %s205, %s206
      %s208 = smul.addr %s207, 8
      %s209 = scalar_lea.vmem %s0, %s208
      %p210 = pneg %p50
      %p211 = pneg %p47
      %p212 = scmp.lt.s32.totalorder %s19, 1
      %s213 = scalar_select %p212, %s19, 1
      %p214 = scmp.lt.s32.totalorder %s20, 1
      %s215 = scalar_select %p214, %s20, 1
      %s216 = smul.addr %s213, 2
      %s217 = sadd.s32 %s215, %s216
      %s218 = smul.addr %s217, 8
      %s219 = scalar_lea.vmem %s1, %s218
      %p220 = pneg %p78
      %p221 = pneg %p75
      %p222 = pneg %p99
      %p223 = pneg %p96
      %p224 = pneg %p120
      %p225 = pneg %p117
      %p226 = pneg %p148
      %p227 = pneg %p145
      %p228 = scmp.lt.s32.totalorder %s19, 1
      %s229 = scalar_select %p228, %s19, 1
      %p230 = scmp.lt.s32.totalorder %s20, 1
      %s231 = scalar_select %p230, %s20, 1
      %s232 = smul.addr %s229, 2
      %s233 = sadd.s32 %s231, %s232
      %s234 = smul.addr %s233, 8
      %s235 = scalar_lea.vmem %s4, %s234
      %p236 = scmp.lt.s32.totalorder %s19, 1
      %s237 = scalar_select %p236, %s19, 1
      %p238 = scmp.lt.s32.totalorder %s20, 1
      %s239 = scalar_select %p238, %s20, 1
      %s240 = smul.addr %s237, 2
      %s241 = sadd.s32 %s239, %s240
      %s242 = smul.addr %s241, 8
      %s243 = scalar_lea.vmem %s0, %s242
      %p244 = scmp.lt.s32.totalorder %s19, 1
      %s245 = scalar_select %p244, %s19, 1
      %p246 = scmp.lt.s32.totalorder %s20, 1
      %s247 = scalar_select %p246, %s20, 1
      %s248 = smul.addr %s245, 2
      %s249 = sadd.s32 %s247, %s248
      %s250 = smul.addr %s249, 8
      %s251 = scalar_lea.vmem %s1, %s250
      %p252 = scmp.lt.s32.totalorder %s19, 1
      %s253 = scalar_select %p252, %s19, 1
      %p254 = scmp.lt.s32.totalorder %s20, 1
      %s255 = scalar_select %p254, %s20, 1
      %s256 = smul.addr %s253, 2
      %s257 = sadd.s32 %s255, %s256
      %s258 = smul.addr %s257, 8
      %s259 = scalar_lea.vmem %s4, %s258
      %v260 = vld [vmem:[%s243] sm:$0xff]
      %v261 = vld [vmem:[%s2] sm:$0x1]
      %v263 = vperm.slane %v261, 0
      %v265 = vmul.f32 %v260, %v263
      %v266 = vld [vmem:[%s3] sm:$0x1]
      %v268 = vperm.slane %v266, 0
      %v270 = vadd.f32 %v265, %v268
      %v271 = vld [vmem:[%s251] sm:$0xff]
      %v272 = vadd.f32 %v270, %v271
      %v273 = vmax.f32 %v272, 0.0
      %vm274 = vcmask 523264
      %275 = vst.msk [vmem:[%s259] sm:$0xff] %vm274, %v273
      %p276 = scmp.lt.s32.totalorder %s19, 1
      %s277 = scalar_select %p276, %s19, 1
      %p278 = scmp.lt.s32.totalorder %s20, 1
      %s279 = scalar_select %p278, %s20, 1
      %s280 = smul.addr %s277, 2
      %s281 = sadd.s32 %s279, %s280
      %s282 = smul.addr %s281, 8
      %s283 = scalar_lea.vmem %s4, %s282
      // Predicated region
      $region37: #{basic_block_forward.5} parent=35 // pred_check
        %p284 = pneg %p145
      $region38: #{basic_block_forward.5} parent=35 // pred_check_branch
        %286 = sbr.rel (%p284) target = $region40
      $region39: #{basic_block_forward.5} parent=35 // pred_region
        _
      $region40: #{basic_block_forward.5} parent=35 // pred_fallthru
        _
    $region36: #{basic_block_forward.5} parent=5 // pred_fallthru
      _
    %p287 = scmp.le.s32.totalorder 2, %s10
    // Predicated region
    $region41: #{basic_block_forward.5} parent=5 // pred_check
      %p288 = pneg %p287
    $region42: #{basic_block_forward.5} parent=5 // pred_check_branch
      %290 = sbr.rel (%p288) target = $region44
    $region43: #{basic_block_forward.5} parent=5 // pred_region
      %s291 = ssub.s32 %s10, 2
      // Predicated region
      $region45: #{basic_block_forward.5} parent=43 // pred_check
        %p292 = pneg %p151
      $region46: #{basic_block_forward.5} parent=43 // pred_check_branch
        %294 = sbr.rel (%p292) target = $region48
      $region47: #{basic_block_forward.5} parent=43 // pred_region
        %p295 = scmp.lt.s32.totalorder %s21, 1
        %s296 = scalar_select %p295, %s21, 1
        %p297 = scmp.lt.s32.totalorder %s22, 1
        %s298 = scalar_select %p297, %s22, 1
        %s299 = smul.addr %s296, 2
        %s300 = sadd.s32 %s298, %s299
        %s301 = smul.addr %s300, 8
        %s302 = scalar_lea.vmem %s4, %s301
      $region48: #{basic_block_forward.5} parent=43 // pred_fallthru
        _
    $region44: #{basic_block_forward.5} parent=5 // pred_fallthru
      _
  $region6: #{basic_block_forward.5} parent=0 // loop_footer
    %s14 = sadd.s32 1, %s10
  $region7: #{basic_block_forward.5} parent=0 // loop_footer_branch
    %9 = sbr.rel target = $region3
  $region8: #{basic_block_forward.5} parent=0 // loop_exit
    _

// kernel: basic_block_forward.3
$region0: #{basic_block_forward.3}
  #allocation0 [shape = 'u32[]', space=smem, size = 0x4, offset = 0x4, fixed_abs, tag = 'smem constant byte address 0x4 - core index']
  #allocation1 [shape = 'u32[72,128]{1,0:T(1,128)}', space=vmem, size = 0x9000, scoped, tag = 'internal scratch']
  #allocation2 [shape = 'bf16[10,64]{1,0:T(8,128)(2,1)}', space=vmem, size = 0x1000, scoped, tag = 'scratch operand']
  %s0 = inlined_call_operand.vmem [shape: f32[2,16,64], index: 0, kind: input, shape index: {}, may-alias: {0,1,2}]
  %s1 = inlined_call_operand.vmem [shape: f32[2,16,64], index: 1, kind: input, shape index: {}, may-alias: {0,1,2}]
  %s2 = inlined_call_operand.vmem [shape: f32[2,16,64], index: 2, kind: input, shape index: {}, may-alias: {0,1,2}]
  %s3 = inlined_call_operand.vmem [shape: bf16[3,64,64], index: 3, kind: input, shape index: {}]
  %s4 = inlined_call_operand.vmem [shape: f32[2,16,64], index: 4, kind: output, shape index: {0}]
  %s5 = inlined_call_operand.vmem [shape: f32[2,2,8,64], index: 5, kind: output, shape index: {1}]
  %6 = xla_tuple %s4, %s5
  %s7 = sld [smem:[#allocation0]]
  $region57: #{basic_block_forward.3} parent=0
    _
  %s9 = ssub.s32 1, %s7
  %s10 = scalar_select 0, %s9, %s7
  loop: start=0, step=1, limit=6
  $region2: #{basic_block_forward.3} parent=0 // loop_pre_header
    _
  $region3: #{basic_block_forward.3} parent=0 // loop_header
    %s12 = sphi 0, %s16
    %p13 = scmp.ge.s32.totalorder %s12, 6
    %s19 = sphi 0, %s31
    %s20 = sphi 0, %s27
    %s21 = sphi 0, %s19
    %s22 = sphi 0, %s20
    %s23 = sphi 0, %s21
    %s24 = sphi 0, %s22
    %s36 = sphi 0, %s38
    %s39 = sphi 0, %s36
    %s40 = sphi 0, %s39
    %s56 = sphi 0, %s40
    %s70 = sphi 0, %s72
    %s73 = sphi 0, %s70
    %s74 = sphi 0, %s73
    %s90 = sphi 0, %s74
    %s104 = sphi 0, %s106
    %s107 = sphi 0, %s104
    %s108 = sphi 0, %s107
    %s124 = sphi 0, %s108
    %s128 = sphi 0, %s128
    %s130 = sphi 0, %s128
    %s131 = sphi 0, %s130
    %s145 = sphi 0, %s131
    %s153 = sphi 0, %s155
    %s156 = sphi 0, %s153
    %s157 = sphi 0, %s156
    %s173 = sphi 0, %s157
    %s181 = sphi 0, %s183
    %s184 = sphi 0, %s181
    %s185 = sphi 0, %s184
    %s201 = sphi 0, %s185
  $region4: #{basic_block_forward.3} parent=0 // loop_header_branch
    %15 = sbr.rel (%p13) target = $region8
  $region5: #{basic_block_forward.3} parent=0 // loop_body
    %s17 = ssub.s32 %s12, 1
    %s18 = ssub.s32 %s12, 2
    %s25 = sadd.s32 1, %s20
    %p26 = scmp.ge.s32.totalorder %s25, 2
    %s27 = scalar_select %p26, 0, %s25
    %s28 = sadd.s32 1, %s19
    %s29 = scalar_select %p26, %s28, %s19
    %p30 = scmp.ge.s32.totalorder %s29, 2
    %s31 = scalar_select %p30, 0, %s29
    %s32 = ssub.s32 %s19, %s31
    %s33 = ssub.s32 %s20, %s27
    %s34 = sor.u32 %s32, %s33
    %p35 = scmp.eq.s32.totalorder %s34, 0
    %s37 = sadd.s32 %s36, 1
    %s38 = scalar_select %p35, %s36, %s37
    %p41 = pneg %p35
    %p42 = scmp.eq.s32.totalorder %s12, 3
    %p43 = por %p41, %p42
    %p44 = scmp.ne.s32.totalorder %s36, %s39
    %p45 = scmp.eq.s32.totalorder %s12, 0
    %p46 = por %p44, %p45
    %p47 = scmp.ne.s32.totalorder %s36, %s39
    %p48 = scmp.eq.s32.totalorder %s17, 3
    %p49 = por %p47, %p48
    %p50 = scmp.ne.s32.totalorder %s39, %s40
    %p51 = scmp.eq.s32.totalorder %s17, 0
    %p52 = por %p50, %p51
    %p53 = scmp.ne.s32.totalorder %s39, %s40
    %p54 = scmp.eq.s32.totalorder %s18, 3
    %p55 = por %p53, %p54
    %p57 = scmp.ne.s32.totalorder %s40, %s56
    %p58 = scmp.eq.s32.totalorder %s18, 0
    %p59 = por %p57, %p58
    %s60 = ssub.s32 %s20, 1
    %p61 = scmp.gt.s32.totalorder %s60, 0
    %s62 = scalar_select %p61, %s60, 0
    %s63 = ssub.s32 %s27, 1
    %p64 = scmp.gt.s32.totalorder %s63, 0
    %s65 = scalar_select %p64, %s63, 0
    %s66 = ssub.s32 %s19, %s31
    %s67 = ssub.s32 %s62, %s65
    %s68 = sor.u32 %s66, %s67
    %p69 = scmp.eq.s32.totalorder %s68, 0
    %s71 = sadd.s32 %s70, 1
    %s72 = scalar_select %p69, %s70, %s71
    %p75 = pneg %p69
    %p76 = scmp.eq.s32.totalorder %s12, 3
    %p77 = por %p75, %p76
    %p78 = scmp.ne.s32.totalorder %s70, %s73
    %p79 = scmp.eq.s32.totalorder %s12, 0
    %p80 = por %p78, %p79
    %p81 = scmp.ne.s32.totalorder %s70, %s73
    %p82 = scmp.eq.s32.totalorder %s17, 3
    %p83 = por %p81, %p82
    %p84 = scmp.ne.s32.totalorder %s73, %s74
    %p85 = scmp.eq.s32.totalorder %s17, 0
    %p86 = por %p84, %p85
    %p87 = scmp.ne.s32.totalorder %s73, %s74
    %p88 = scmp.eq.s32.totalorder %s18, 3
    %p89 = por %p87, %p88
    %p91 = scmp.ne.s32.totalorder %s74, %s90
    %p92 = scmp.eq.s32.totalorder %s18, 0
    %p93 = por %p91, %p92
    %s94 = sadd.s32 %s20, 1
    %p95 = scmp.lt.s32.totalorder %s94, 1
    %s96 = scalar_select %p95, %s94, 1
    %s97 = sadd.s32 %s27, 1
    %p98 = scmp.lt.s32.totalorder %s97, 1
    %s99 = scalar_select %p98, %s97, 1
    %s100 = ssub.s32 %s19, %s31
    %s101 = ssub.s32 %s96, %s99
    %s102 = sor.u32 %s100, %s101
    %p103 = scmp.eq.s32.totalorder %s102, 0
    %s105 = sadd.s32 %s104, 1
    %s106 = scalar_select %p103, %s104, %s105
    %p109 = pneg %p103
    %p110 = scmp.eq.s32.totalorder %s12, 3
    %p111 = por %p109, %p110
    %p112 = scmp.ne.s32.totalorder %s104, %s107
    %p113 = scmp.eq.s32.totalorder %s12, 0
    %p114 = por %p112, %p113
    %p115 = scmp.ne.s32.totalorder %s104, %s107
    %p116 = scmp.eq.s32.totalorder %s17, 3
    %p117 = por %p115, %p116
    %p118 = scmp.ne.s32.totalorder %s107, %s108
    %p119 = scmp.eq.s32.totalorder %s17, 0
    %p120 = por %p118, %p119
    %p121 = scmp.ne.s32.totalorder %s107, %s108
    %p122 = scmp.eq.s32.totalorder %s18, 3
    %p123 = por %p121, %p122
    %p125 = scmp.ne.s32.totalorder %s108, %s124
    %p126 = scmp.eq.s32.totalorder %s18, 0
    %p127 = por %p125, %p126
    %s129 = sadd.s32 %s128, 1
    %p132 = scmp.eq.s32.totalorder %s12, 3
    %p133 = scmp.ne.s32.totalorder %s128, %s130
    %p134 = scmp.eq.s32.totalorder %s12, 0
    %p135 = por %p133, %p134
    %p136 = scmp.ne.s32.totalorder %s128, %s130
    %p137 = scmp.eq.s32.totalorder %s17, 3
    %p138 = por %p136, %p137
    %p139 = scmp.ne.s32.totalorder %s130, %s131
    %p140 = scmp.eq.s32.totalorder %s17, 0
    %p141 = por %p139, %p140
    %p142 = scmp.ne.s32.totalorder %s130, %s131
    %p143 = scmp.eq.s32.totalorder %s18, 3
    %p144 = por %p142, %p143
    %p146 = scmp.ne.s32.totalorder %s131, %s145
    %p147 = scmp.eq.s32.totalorder %s18, 0
    %p148 = por %p146, %p147
    %s149 = ssub.s32 %s19, %s31
    %s150 = ssub.s32 %s20, %s27
    %s151 = sor.u32 %s149, %s150
    %p152 = scmp.eq.s32.totalorder %s151, 0
    %s154 = sadd.s32 %s153, 1
    %s155 = scalar_select %p152, %s153, %s154
    %p158 = pneg %p152
    %p159 = scmp.eq.s32.totalorder %s12, 3
    %p160 = por %p158, %p159
    %p161 = scmp.ne.s32.totalorder %s153, %s156
    %p162 = scmp.eq.s32.totalorder %s12, 0
    %p163 = por %p161, %p162
    %p164 = scmp.ne.s32.totalorder %s153, %s156
    %p165 = scmp.eq.s32.totalorder %s17, 3
    %p166 = por %p164, %p165
    %p167 = scmp.ne.s32.totalorder %s156, %s157
    %p168 = scmp.eq.s32.totalorder %s17, 0
    %p169 = por %p167, %p168
    %p170 = scmp.ne.s32.totalorder %s156, %s157
    %p171 = scmp.eq.s32.totalorder %s18, 3
    %p172 = por %p170, %p171
    %p174 = scmp.ne.s32.totalorder %s157, %s173
    %p175 = scmp.eq.s32.totalorder %s18, 0
    %p176 = por %p174, %p175
    %s177 = ssub.s32 %s19, %s31
    %s178 = ssub.s32 %s20, %s27
    %s179 = sor.u32 %s177, %s178
    %p180 = scmp.eq.s32.totalorder %s179, 0
    %s182 = sadd.s32 %s181, 1
    %s183 = scalar_select %p180, %s181, %s182
    %p186 = pneg %p180
    %p187 = scmp.eq.s32.totalorder %s12, 3
    %p188 = por %p186, %p187
    %p189 = scmp.ne.s32.totalorder %s181, %s184
    %p190 = scmp.eq.s32.totalorder %s12, 0
    %p191 = por %p189, %p190
    %p192 = scmp.ne.s32.totalorder %s181, %s184
    %p193 = scmp.eq.s32.totalorder %s17, 3
    %p194 = por %p192, %p193
    %p195 = scmp.ne.s32.totalorder %s184, %s185
    %p196 = scmp.eq.s32.totalorder %s17, 0
    %p197 = por %p195, %p196
    %p198 = scmp.ne.s32.totalorder %s184, %s185
    %p199 = scmp.eq.s32.totalorder %s18, 3
    %p200 = por %p198, %p199
    %p202 = scmp.ne.s32.totalorder %s185, %s201
    %p203 = scmp.eq.s32.totalorder %s18, 0
    %p204 = por %p202, %p203
    %p205 = scmp.le.s32.totalorder 1, %s12
    %p206 = scmp.lt.s32.totalorder %s12, 5
    %p207 = pnand %p205, %p206
    %p208 = pneg %p207
    // Predicated region
    $region9: #{basic_block_forward.3} parent=5 // pred_check
      _
    $region10: #{basic_block_forward.3} parent=5 // pred_check_branch
      %210 = sbr.rel (%p207) target = $region12
    $region11: #{basic_block_forward.3} parent=5 // pred_region
      %s211 = ssub.s32 %s12, 1
      // Predicated region
      $region13: #{basic_block_forward.3} parent=11 // pred_check
        %p212 = pneg %p141
      $region14: #{basic_block_forward.3} parent=11 // pred_check_branch
        %214 = sbr.rel (%p212) target = $region16
      $region15: #{basic_block_forward.3} parent=11 // pred_region
        _
      $region16: #{basic_block_forward.3} parent=11 // pred_fallthru
        _
    $region12: #{basic_block_forward.3} parent=5 // pred_fallthru
      _
    %p215 = scmp.lt.s32.totalorder %s12, 4
    // Predicated region
    $region17: #{basic_block_forward.3} parent=5 // pred_check
      %p216 = pneg %p215
    $region18: #{basic_block_forward.3} parent=5 // pred_check_branch
      %218 = sbr.rel (%p216) target = $region20
    $region19: #{basic_block_forward.3} parent=5 // pred_region
      // Predicated region
      $region21: #{basic_block_forward.3} parent=19 // pred_check
        %p219 = pneg %p46
      $region22: #{basic_block_forward.3} parent=19 // pred_check_branch
        %221 = sbr.rel (%p219) target = $region24
      $region23: #{basic_block_forward.3} parent=19 // pred_region
        %p222 = scmp.lt.s32.totalorder %s19, 1
        %s223 = scalar_select %p222, %s19, 1
        %p224 = scmp.lt.s32.totalorder %s20, 1
        %s225 = scalar_select %p224, %s20, 1
        %s226 = smul.addr %s223, 2
        %s227 = sadd.s32 %s225, %s226
        %s228 = smul.addr %s227, 8
        %s229 = scalar_lea.vmem %s0, %s228
      $region24: #{basic_block_forward.3} parent=19 // pred_fallthru
        _
      // Predicated region
      $region25: #{basic_block_forward.3} parent=19 // pred_check
        %p230 = pneg %p80
      $region26: #{basic_block_forward.3} parent=19 // pred_check_branch
        %232 = sbr.rel (%p230) target = $region28
      $region27: #{basic_block_forward.3} parent=19 // pred_region
        %s233 = ssub.s32 %s20, 1
        %p234 = scmp.gt.s32.totalorder %s233, 0
        %s235 = scalar_select %p234, %s233, 0
        %p236 = scmp.lt.s32.totalorder %s19, 1
        %s237 = scalar_select %p236, %s19, 1
        %p238 = scmp.lt.s32.totalorder %s235, 1
        %s239 = scalar_select %p238, %s235, 1
        %s240 = smul.addr %s237, 2
        %s241 = sadd.s32 %s239, %s240
        %s242 = smul.addr %s241, 8
        %s243 = scalar_lea.vmem %s1, %s242
        %s244 = ssub.s32 %s20, 1
        %p245 = scmp.gt.s32.totalorder %s244, 0
        %s246 = scalar_select %p245, %s244, 0
      $region28: #{basic_block_forward.3} parent=19 // pred_fallthru
        _
      // Predicated region
      $region29: #{basic_block_forward.3} parent=19 // pred_check
        %p247 = pneg %p114
      $region30: #{basic_block_forward.3} parent=19 // pred_check_branch
        %249 = sbr.rel (%p247) target = $region32
      $region31: #{basic_block_forward.3} parent=19 // pred_region
        %s250 = sadd.s32 %s20, 1
        %p251 = scmp.lt.s32.totalorder %s250, 1
        %s252 = scalar_select %p251, %s250, 1
        %p253 = scmp.lt.s32.totalorder %s19, 1
        %s254 = scalar_select %p253, %s19, 1
        %p255 = scmp.lt.s32.totalorder %s252, 1
        %s256 = scalar_select %p255, %s252, 1
        %s257 = smul.addr %s254, 2
        %s258 = sadd.s32 %s256, %s257
        %s259 = smul.addr %s258, 8
        %s260 = scalar_lea.vmem %s2, %s259
        %s261 = sadd.s32 %s20, 1
        %p262 = scmp.lt.s32.totalorder %s261, 1
        %s263 = scalar_select %p262, %s261, 1
      $region32: #{basic_block_forward.3} parent=19 // pred_fallthru
        _
    $region20: #{basic_block_forward.3} parent=5 // pred_fallthru
      _
    %p264 = scmp.le.s32.totalorder 1, %s12
    %p265 = scmp.lt.s32.totalorder %s12, 5
    %p266 = pnand %p264, %p265
    %p267 = pneg %p266
    // Predicated region
    $region33: #{basic_block_forward.3} parent=5 // pred_check
      _
    $region34: #{basic_block_forward.3} parent=5 // pred_check_branch
      %269 = sbr.rel (%p266) target = $region36
    $region35: #{basic_block_forward.3} parent=5 // pred_region
      %s270 = ssub.s32 %s12, 1
      %p271 = scmp.lt.s32.totalorder %s21, 1
      %s272 = scalar_select %p271, %s21, 1
      %p273 = scmp.lt.s32.totalorder %s22, 1
      %s274 = scalar_select %p273, %s22, 1
      %s275 = smul.addr %s272, 2
      %s276 = sadd.s32 %s274, %s275
      %s277 = smul.addr %s276, 8
      %s278 = scalar_lea.vmem %s0, %s277
      %p279 = pneg %p52
      %p280 = pneg %p49
      %s281 = ssub.s32 %s22, 1
      %p282 = scmp.gt.s32.totalorder %s281, 0
      %s283 = scalar_select %p282, %s281, 0
      %p284 = scmp.lt.s32.totalorder %s21, 1
      %s285 = scalar_select %p284, %s21, 1
      %p286 = scmp.lt.s32.totalorder %s283, 1
      %s287 = scalar_select %p286, %s283, 1
      %s288 = smul.addr %s285, 2
      %s289 = sadd.s32 %s287, %s288
      %s290 = smul.addr %s289, 8
      %s291 = scalar_lea.vmem %s1, %s290
      %p292 = pneg %p86
      %p293 = pneg %p83
      %s294 = sadd.s32 %s22, 1
      %p295 = scmp.lt.s32.totalorder %s294, 1
      %s296 = scalar_select %p295, %s294, 1
      %p297 = scmp.lt.s32.totalorder %s21, 1
      %s298 = scalar_select %p297, %s21, 1
      %p299 = scmp.lt.s32.totalorder %s296, 1
      %s300 = scalar_select %p299, %s296, 1
      %s301 = smul.addr %s298, 2
      %s302 = sadd.s32 %s300, %s301
      %s303 = smul.addr %s302, 8
      %s304 = scalar_lea.vmem %s2, %s303
      %p305 = pneg %p120
      %p306 = pneg %p117
      %p307 = pneg %p141
      %p308 = pneg %p138
      %p309 = pneg %p169
      %p310 = pneg %p166
      %p311 = scmp.lt.s32.totalorder %s21, 1
      %s312 = scalar_select %p311, %s21, 1
      %p313 = scmp.lt.s32.totalorder %s22, 1
      %s314 = scalar_select %p313, %s22, 1
      %s315 = smul.addr %s312, 2
      %s316 = sadd.s32 %s314, %s315
      %s317 = smul.addr %s316, 8
      %s318 = scalar_lea.vmem %s4, %s317
      %p319 = pneg %p197
      %p320 = pneg %p194
      %p321 = scmp.lt.s32.totalorder %s21, 1
      %s322 = scalar_select %p321, %s21, 1
      %p323 = scmp.lt.s32.totalorder %s22, 1
      %s324 = scalar_select %p323, %s22, 1
      %s325 = smul.addr %s322, 2
      %s326 = sadd.s32 %s324, %s325
      %s327 = smul.addr %s326, 8
      %s328 = scalar_lea.vmem %s5, %s327
      %p329 = scmp.lt.s32.totalorder %s21, 1
      %s330 = scalar_select %p329, %s21, 1
      %p331 = scmp.lt.s32.totalorder %s22, 1
      %s332 = scalar_select %p331, %s22, 1
      %s333 = smul.addr %s330, 2
      %s334 = sadd.s32 %s332, %s333
      %s335 = smul.addr %s334, 8
      %s336 = scalar_lea.vmem %s0, %s335
      %s337 = ssub.s32 %s22, 1
      %p338 = scmp.gt.s32.totalorder %s337, 0
      %s339 = scalar_select %p338, %s337, 0
      %p340 = scmp.lt.s32.totalorder %s21, 1
      %s341 = scalar_select %p340, %s21, 1
      %p342 = scmp.lt.s32.totalorder %s339, 1
      %s343 = scalar_select %p342, %s339, 1
      %s344 = smul.addr %s341, 2
      %s345 = sadd.s32 %s343, %s344
      %s346 = smul.addr %s345, 8
      %s347 = scalar_lea.vmem %s1, %s346
      %s348 = ssub.s32 %s22, 1
      %p349 = scmp.gt.s32.totalorder %s348, 0
      %s350 = scalar_select %p349, %s348, 0
      %s351 = sadd.s32 %s22, 1
      %p352 = scmp.lt.s32.totalorder %s351, 1
      %s353 = scalar_select %p352, %s351, 1
      %p354 = scmp.lt.s32.totalorder %s21, 1
      %s355 = scalar_select %p354, %s21, 1
      %p356 = scmp.lt.s32.totalorder %s353, 1
      %s357 = scalar_select %p356, %s353, 1
      %s358 = smul.addr %s355, 2
      %s359 = sadd.s32 %s357, %s358
      %s360 = smul.addr %s359, 8
      %s361 = scalar_lea.vmem %s2, %s360
      %s362 = sadd.s32 %s22, 1
      %p363 = scmp.lt.s32.totalorder %s362, 1
      %s364 = scalar_select %p363, %s362, 1
      %p365 = scmp.lt.s32.totalorder %s21, 1
      %s366 = scalar_select %p365, %s21, 1
      %p367 = scmp.lt.s32.totalorder %s22, 1
      %s368 = scalar_select %p367, %s22, 1
      %s369 = smul.addr %s366, 2
      %s370 = sadd.s32 %s368, %s369
      %s371 = smul.addr %s370, 8
      %s372 = scalar_lea.vmem %s4, %s371
      %p373 = scmp.lt.s32.totalorder %s21, 1
      %s374 = scalar_select %p373, %s21, 1
      %p375 = scmp.lt.s32.totalorder %s22, 1
      %s376 = scalar_select %p375, %s22, 1
      %s377 = smul.addr %s374, 2
      %s378 = sadd.s32 %s376, %s377
      %s379 = smul.addr %s378, 8
      %s380 = scalar_lea.vmem %s5, %s379
      %p382 = scmp.eq.s32.totalorder %s22, 0
      %v383 = vld [vmem:[%s347 + $0x7] sm:$0x1]
      %s384 = scalar_select %p382, 1, 0
      %v385 = vstv %s384
      %vm386 = vcmp.eq.s32.totalorder %v385, 1
      %v387 = vsel %vm386, 0.0, %v383
      %p388 = scmp.eq.s32.totalorder %s22, 1
      %v389 = vld [vmem:[%s361] sm:$0x1]
      %s390 = scalar_select %p388, 1, 0
      %v391 = vstv %s390
      %vm392 = vcmp.eq.s32.totalorder %v391, 1
      %v393 = vsel %vm392, 0.0, %v389
      %v394 = vpack.c.bf16 %v387, %v387
      %vm395 = vcmask 516096
      %vm396 = vsmask.f32 256
      %vm397 = vmand %vm395, %vm396
      %v398 = vld [vmem:[#allocation2] sm:$0x1]
      %v399 = vsel %vm397, %v394, %v398
      %400 = vst [vmem:[#allocation2] sm:$0x1] %v399
      %v401 = vld [vmem:[%s336] sm:$0xff]
      %v402 = vpack.c.bf16 %v401, %v401
      %v404 = vshrl.u32 %v402, 16
      %v406 = vrot.slane %v404, 7
      %v407 = vshll.u32 %v402, 16
      %v409 = vor.u32 %v406, %v407
      %v410 = vrot.slane %v406, 4
      %vm413 = vcmask 519168
      %vm414 = vsmask.f32 7938
      %vm415 = vmand %vm413, %vm414
      %v416 = vld [vmem:[#allocation2] sm:$0xf]
      %v417 = vsel %vm415, %v409, %v416
      %418 = vst [vmem:[#allocation2] sm:$0xf] %v417
      %v419 = vld [vmem:[#allocation2 + $0x4] sm:$0x1]
      %v420 = vsel %vm397, %v410, %v419
      %421 = vst [vmem:[#allocation2 + $0x4] sm:$0x1] %v420
      %v422 = vpack.c.bf16 %v393, %v393
      %v424 = vshll.u32 %v422, 16
      %vm427 = vmand %vm395, %vm414
      %v428 = vld [vmem:[#allocation2 + $0x4] sm:$0x1]
      %v429 = vsel %vm427, %v424, %v428
      %430 = vst [vmem:[#allocation2 + $0x4] sm:$0x1] %v429
      %v431 = vld [vmem:[#allocation2] sm:$0xf]
      %v432 = vld [vmem:[%s3] sm:$0xf]
      %v433 = vld [vmem:[%s3 + $0x4] sm:$0xf]
      %v434 = vld [vmem:[%s3 + $0x8] sm:$0xf]
      %v435 = vld [vmem:[%s3 + $0xc] sm:$0xf]
      %v436 = vld [vmem:[%s3 + $0x10] sm:$0xf]
      %v437 = vld [vmem:[%s3 + $0x14] sm:$0xf]
      %v438 = vld [vmem:[%s3 + $0x18] sm:$0xf]
      %v439 = vld [vmem:[%s3 + $0x1c] sm:$0xf]
      %v440 = vld [vmem:[#allocation2 + $0x4] sm:$0x1]
      %s441 = scalar_lea.vmem %s3, 32
      %v442 = vld [vmem:[%s441] sm:$0xf]
      %v443 = vld [vmem:[%s441 + $0x4] sm:$0xf]
      %v444 = vld [vmem:[%s441 + $0x8] sm:$0xf]
      %v445 = vld [vmem:[%s441 + $0xc] sm:$0xf]
      %v446 = vld [vmem:[%s441 + $0x10] sm:$0xf]
      %v447 = vld [vmem:[%s441 + $0x14] sm:$0xf]
      %v448 = vld [vmem:[%s441 + $0x18] sm:$0xf]
      %v449 = vld [vmem:[%s441 + $0x1c] sm:$0xf]
      %v452 = vunpack.c.l.b16 %v431
      %v453 = vunpack.c.l.b16 %v440
      %v454 = vpack.c.b16 %v453, %v452
      %v456 = vshrl.u32 %v454, 16
      %v458 = vshll.u32 %v454, 16
      %v460 = vrot.slane %v458, 1
      %v461 = vor.u32 %v456, %v460
      %v470 = vunpack.c.l.b16 %v442
      %v471 = vunpack.c.l.b16 %v443
      %v472 = vunpack.c.l.b16 %v444
      %v473 = vunpack.c.l.b16 %v445
      %v474 = vunpack.c.l.b16 %v446
      %v475 = vunpack.c.l.b16 %v447
      %v476 = vunpack.c.l.b16 %v448
      %v477 = vunpack.c.l.b16 %v449
      %v478 = vpack.c.b16 %v471, %v470
      %v479 = vpack.c.b16 %v473, %v472
      %v480 = vpack.c.b16 %v475, %v474
      %v481 = vpack.c.b16 %v477, %v476
      %vm486 = vcmask 523264
      %v488 = vsel %vm486, %v461, 0
      %490 = vmatpush.bf16.msra.mxu0 0
      %491 = vmatpush.bf16.msra.mxu0 0
      %492 = vmatpush.bf16.msra.mxu0 0
      %493 = vmatpush.bf16.msra.mxu0 0
      %494 = vmatpush.bf16.msra.mxu0 %v481
      %495 = vmatpush.bf16.msra.mxu0 %v480
      %496 = vmatpush.bf16.msra.mxu0 %v479
      %497 = vmatpush.bf16.msra.mxu0 %v478
      %498 = vmatmul.bf16.gmra.mxu0 %v488
      %v499 = vpop.f32.mrf.mxu0
      %v500 = vadd.f32 0.0, %v499
      %v501 = vpop.f32.mrf.mxu0
      %502 = vdwg.mxu0
      %v511 = vunpack.c.l.b16 %v432
      %v512 = vunpack.c.l.b16 %v433
      %v513 = vunpack.c.l.b16 %v434
      %v514 = vunpack.c.l.b16 %v435
      %v515 = vunpack.c.l.b16 %v436
      %v516 = vunpack.c.l.b16 %v437
      %v517 = vunpack.c.l.b16 %v438
      %v518 = vunpack.c.l.b16 %v439
      %v519 = vpack.c.b16 %v512, %v511
      %v520 = vpack.c.b16 %v514, %v513
      %v521 = vpack.c.b16 %v516, %v515
      %v522 = vpack.c.b16 %v518, %v517
      %v528 = vsel %vm486, %v431, 0
      %530 = vmatpush.bf16.msra.mxu0 0
      %531 = vmatpush.bf16.msra.mxu0 0
      %532 = vmatpush.bf16.msra.mxu0 0
      %533 = vmatpush.bf16.msra.mxu0 0
      %534 = vmatpush.bf16.msra.mxu0 %v522
      %535 = vmatpush.bf16.msra.mxu0 %v521
      %536 = vmatpush.bf16.msra.mxu0 %v520
      %537 = vmatpush.bf16.msra.mxu0 %v519
      %538 = vmatmul.bf16.gmra.mxu0 %v528
      %v539 = vpop.f32.mrf.mxu0
      %v540 = vadd.f32 %v500, %v539
      %v541 = vpop.f32.mrf.mxu0
      %542 = vdwg.mxu0
      %v543 = vld [vmem:[#allocation2] sm:$0xe]
      %s544 = scalar_lea.vmem %s3, 64
      %v545 = vld [vmem:[%s544] sm:$0xf]
      %v546 = vld [vmem:[%s544 + $0x4] sm:$0xf]
      %v547 = vld [vmem:[%s544 + $0x8] sm:$0xf]
      %v548 = vld [vmem:[%s544 + $0xc] sm:$0xf]
      %v549 = vld [vmem:[%s544 + $0x10] sm:$0xf]
      %v550 = vld [vmem:[%s544 + $0x14] sm:$0xf]
      %v551 = vld [vmem:[%s544 + $0x18] sm:$0xf]
      %v552 = vld [vmem:[%s544 + $0x1c] sm:$0xf]
      %v554 = vunpack.c.l.b16 %v543
      %v555 = vpack.c.b16 %v453, %v554
      %v556 = vrot.slane %v555, 1
      %v565 = vunpack.c.l.b16 %v545
      %v566 = vunpack.c.l.b16 %v546
      %v567 = vunpack.c.l.b16 %v547
      %v568 = vunpack.c.l.b16 %v548
      %v569 = vunpack.c.l.b16 %v549
      %v570 = vunpack.c.l.b16 %v550
      %v571 = vunpack.c.l.b16 %v551
      %v572 = vunpack.c.l.b16 %v552
      %v573 = vpack.c.b16 %v566, %v565
      %v574 = vpack.c.b16 %v568, %v567
      %v575 = vpack.c.b16 %v570, %v569
      %v576 = vpack.c.b16 %v572, %v571
      %v582 = vsel %vm486, %v556, 0
      %584 = vmatpush.bf16.msra.mxu0 0
      %585 = vmatpush.bf16.msra.mxu0 0
      %586 = vmatpush.bf16.msra.mxu0 0
      %587 = vmatpush.bf16.msra.mxu0 0
      %588 = vmatpush.bf16.msra.mxu0 %v576
      %589 = vmatpush.bf16.msra.mxu0 %v575
      %590 = vmatpush.bf16.msra.mxu0 %v574
      %591 = vmatpush.bf16.msra.mxu0 %v573
      %592 = vmatmul.bf16.gmra.mxu0 %v582
      %v593 = vpop.f32.mrf.mxu0
      %v594 = vadd.f32 0.0, %v593
      %v595 = vpop.f32.mrf.mxu0
      %596 = vdwg.mxu0
      %v597 = vadd.f32 %v540, %v594
      %598 = vst.msk [vmem:[%s372] sm:$0xff] %vm486, %v597
      %v599 = vsel %vm486, %v597, 0.0
      %v600 = vrot.slane %v599, 4
      %v601 = vadd.f32 %v599, %v600
      %v602 = vrot.slane %v601, 2
      %v603 = vadd.f32 %v601, %v602
      %v604 = vrot.slane %v603, 1
      %v605 = vadd.f32 %v603, %v604
      %v606 = vmul.f32 %v597, %v597
      %v607 = vsel %vm486, %v606, 0.0
      %v608 = vrot.slane %v607, 4
      %v609 = vadd.f32 %v607, %v608
      %v610 = vrot.slane %v609, 2
      %v611 = vadd.f32 %v609, %v610
      %v612 = vrot.slane %v611, 1
      %v613 = vadd.f32 %v611, %v612
      %vm614 = vcmask 1040384
      %v615 = vsel %vm614, %v605, %v613
      %vm616 = vcmask 1041408
      %v617 = vsel %vm616, %v615, 0.0
      %618 = vst.msk [vmem:[%s380] sm:$0xff] %vm486, %v617
      %p619 = scmp.lt.s32.totalorder %s21, 1
      %s620 = scalar_select %p619, %s21, 1
      %p621 = scmp.lt.s32.totalorder %s22, 1
      %s622 = scalar_select %p621, %s22, 1
      %s623 = smul.addr %s620, 2
      %s624 = sadd.s32 %s622, %s623
      %s625 = smul.addr %s624, 8
      %s626 = scalar_lea.vmem %s4, %s625
      %p627 = scmp.lt.s32.totalorder %s21, 1
      %s628 = scalar_select %p627, %s21, 1
      %p629 = scmp.lt.s32.totalorder %s22, 1
      %s630 = scalar_select %p629, %s22, 1
      %s631 = smul.addr %s628, 2
      %s632 = sadd.s32 %s630, %s631
      %s633 = smul.addr %s632, 8
      %s634 = scalar_lea.vmem %s5, %s633
      // Predicated region
      $region37: #{basic_block_forward.3} parent=35 // pred_check
        %p635 = pneg %p166
      $region38: #{basic_block_forward.3} parent=35 // pred_check_branch
        %637 = sbr.rel (%p635) target = $region40
      $region39: #{basic_block_forward.3} parent=35 // pred_region
        _
      $region40: #{basic_block_forward.3} parent=35 // pred_fallthru
        _
      // Predicated region
      $region41: #{basic_block_forward.3} parent=35 // pred_check
        %p638 = pneg %p194
      $region42: #{basic_block_forward.3} parent=35 // pred_check_branch
        %640 = sbr.rel (%p638) target = $region44
      $region43: #{basic_block_forward.3} parent=35 // pred_region
        _
      $region44: #{basic_block_forward.3} parent=35 // pred_fallthru
        _
    $region36: #{basic_block_forward.3} parent=5 // pred_fallthru
      _
    %p641 = scmp.le.s32.totalorder 2, %s12
    // Predicated region
    $region45: #{basic_block_forward.3} parent=5 // pred_check
      %p642 = pneg %p641
    $region46: #{basic_block_forward.3} parent=5 // pred_check_branch
      %644 = sbr.rel (%p642) target = $region48
    $region47: #{basic_block_forward.3} parent=5 // pred_region
      %s645 = ssub.s32 %s12, 2
      // Predicated region
      $region49: #{basic_block_forward.3} parent=47 // pred_check
        %p646 = pneg %p172
      $region50: #{basic_block_forward.3} parent=47 // pred_check_branch
        %648 = sbr.rel (%p646) target = $region52
      $region51: #{basic_block_forward.3} parent=47 // pred_region
        %p649 = scmp.lt.s32.totalorder %s23, 1
        %s650 = scalar_select %p649, %s23, 1
        %p651 = scmp.lt.s32.totalorder %s24, 1
        %s652 = scalar_select %p651, %s24, 1
        %s653 = smul.addr %s650, 2
        %s654 = sadd.s32 %s652, %s653
        %s655 = smul.addr %s654, 8
        %s656 = scalar_lea.vmem %s4, %s655
      $region52: #{basic_block_forward.3} parent=47 // pred_fallthru
        _
      // Predicated region
      $region53: #{basic_block_forward.3} parent=47 // pred_check
        %p657 = pneg %p200
      $region54: #{basic_block_forward.3} parent=47 // pred_check_branch
        %659 = sbr.rel (%p657) target = $region56
      $region55: #{basic_block_forward.3} parent=47 // pred_region
        %p660 = scmp.lt.s32.totalorder %s23, 1
        %s661 = scalar_select %p660, %s23, 1
        %p662 = scmp.lt.s32.totalorder %s24, 1
        %s663 = scalar_select %p662, %s24, 1
        %s664 = smul.addr %s661, 2
        %s665 = sadd.s32 %s663, %s664
        %s666 = smul.addr %s665, 8
        %s667 = scalar_lea.vmem %s5, %s666
      $region56: #{basic_block_forward.3} parent=47 // pred_fallthru
        _
    $region48: #{basic_block_forward.3} parent=5 // pred_fallthru
      _
  $region6: #{basic_block_forward.3} parent=0 // loop_footer
    %s16 = sadd.s32 1, %s12
  $region7: #{basic_block_forward.3} parent=0 // loop_footer_branch
    %11 = sbr.rel target = $region3
  $region8: #{basic_block_forward.3} parent=0 // loop_exit
    _

// kernel: basic_block_forward.4
$region0: #{basic_block_forward.4}
  #allocation0 [shape = 'u32[]', space=smem, size = 0x4, offset = 0x4, fixed_abs, tag = 'smem constant byte address 0x4 - core index']
  #allocation1 [shape = 'u32[72,128]{1,0:T(1,128)}', space=vmem, size = 0x9000, scoped, tag = 'internal scratch']
  #allocation2 [shape = 'bf16[10,64]{1,0:T(8,128)(2,1)}', space=vmem, size = 0x1000, scoped, tag = 'scratch operand']
  %s0 = inlined_call_operand.vmem [shape: f32[2,16,64], index: 0, kind: input, shape index: {}, may-alias: {0,1,2}]
  %s1 = inlined_call_operand.vmem [shape: f32[2,16,64], index: 1, kind: input, shape index: {}, may-alias: {0,1,2}]
  %s2 = inlined_call_operand.vmem [shape: f32[2,16,64], index: 2, kind: input, shape index: {}, may-alias: {0,1,2}]
  %s3 = inlined_call_operand.vmem [shape: bf16[3,64,64], index: 3, kind: input, shape index: {}]
  %s4 = inlined_call_operand.vmem [shape: f32[1,64], index: 4, kind: input, shape index: {}]
  %s5 = inlined_call_operand.vmem [shape: f32[1,64], index: 5, kind: input, shape index: {}]
  %s6 = inlined_call_operand.vmem [shape: f32[2,16,64], index: 6, kind: output, shape index: {0}]
  %s7 = inlined_call_operand.vmem [shape: f32[2,2,8,64], index: 7, kind: output, shape index: {1}]
  %8 = xla_tuple %s6, %s7
  %s9 = sld [smem:[#allocation0]]
  $region65: #{basic_block_forward.4} parent=0
    _
  %s11 = ssub.s32 1, %s9
  %s12 = scalar_select 0, %s11, %s9
  loop: start=0, step=1, limit=6
  $region2: #{basic_block_forward.4} parent=0 // loop_pre_header
    _
  $region3: #{basic_block_forward.4} parent=0 // loop_header
    %s14 = sphi 0, %s18
    %p15 = scmp.ge.s32.totalorder %s14, 6
    %s21 = sphi 0, %s33
    %s22 = sphi 0, %s29
    %s23 = sphi 0, %s21
    %s24 = sphi 0, %s22
    %s25 = sphi 0, %s23
    %s26 = sphi 0, %s24
    %s38 = sphi 0, %s40
    %s41 = sphi 0, %s38
    %s42 = sphi 0, %s41
    %s58 = sphi 0, %s42
    %s72 = sphi 0, %s74
    %s75 = sphi 0, %s72
    %s76 = sphi 0, %s75
    %s92 = sphi 0, %s76
    %s106 = sphi 0, %s108
    %s109 = sphi 0, %s106
    %s110 = sphi 0, %s109
    %s126 = sphi 0, %s110
    %s130 = sphi 0, %s130
    %s132 = sphi 0, %s130
    %s133 = sphi 0, %s132
    %s147 = sphi 0, %s133
    %s151 = sphi 0, %s151
    %s153 = sphi 0, %s151
    %s154 = sphi 0, %s153
    %s168 = sphi 0, %s154
    %s172 = sphi 0, %s172
    %s174 = sphi 0, %s172
    %s175 = sphi 0, %s174
    %s189 = sphi 0, %s175
    %s197 = sphi 0, %s199
    %s200 = sphi 0, %s197
    %s201 = sphi 0, %s200
    %s217 = sphi 0, %s201
    %s225 = sphi 0, %s227
    %s228 = sphi 0, %s225
    %s229 = sphi 0, %s228
    %s245 = sphi 0, %s229
  $region4: #{basic_block_forward.4} parent=0 // loop_header_branch
    %17 = sbr.rel (%p15) target = $region8
  $region5: #{basic_block_forward.4} parent=0 // loop_body
    %s19 = ssub.s32 %s14, 1
    %s20 = ssub.s32 %s14, 2
    %s27 = sadd.s32 1, %s22
    %p28 = scmp.ge.s32.totalorder %s27, 2
    %s29 = scalar_select %p28, 0, %s27
    %s30 = sadd.s32 1, %s21
    %s31 = scalar_select %p28, %s30, %s21
    %p32 = scmp.ge.s32.totalorder %s31, 2
    %s33 = scalar_select %p32, 0, %s31
    %s34 = ssub.s32 %s21, %s33
    %s35 = ssub.s32 %s22, %s29
    %s36 = sor.u32 %s34, %s35
    %p37 = scmp.eq.s32.totalorder %s36, 0
    %s39 = sadd.s32 %s38, 1
    %s40 = scalar_select %p37, %s38, %s39
    %p43 = pneg %p37
    %p44 = scmp.eq.s32.totalorder %s14, 3
    %p45 = por %p43, %p44
    %p46 = scmp.ne.s32.totalorder %s38, %s41
    %p47 = scmp.eq.s32.totalorder %s14, 0
    %p48 = por %p46, %p47
    %p49 = scmp.ne.s32.totalorder %s38, %s41
    %p50 = scmp.eq.s32.totalorder %s19, 3
    %p51 = por %p49, %p50
    %p52 = scmp.ne.s32.totalorder %s41, %s42
    %p53 = scmp.eq.s32.totalorder %s19, 0
    %p54 = por %p52, %p53
    %p55 = scmp.ne.s32.totalorder %s41, %s42
    %p56 = scmp.eq.s32.totalorder %s20, 3
    %p57 = por %p55, %p56
    %p59 = scmp.ne.s32.totalorder %s42, %s58
    %p60 = scmp.eq.s32.totalorder %s20, 0
    %p61 = por %p59, %p60
    %s62 = ssub.s32 %s22, 1
    %p63 = scmp.gt.s32.totalorder %s62, 0
    %s64 = scalar_select %p63, %s62, 0
    %s65 = ssub.s32 %s29, 1
    %p66 = scmp.gt.s32.totalorder %s65, 0
    %s67 = scalar_select %p66, %s65, 0
    %s68 = ssub.s32 %s21, %s33
    %s69 = ssub.s32 %s64, %s67
    %s70 = sor.u32 %s68, %s69
    %p71 = scmp.eq.s32.totalorder %s70, 0
    %s73 = sadd.s32 %s72, 1
    %s74 = scalar_select %p71, %s72, %s73
    %p77 = pneg %p71
    %p78 = scmp.eq.s32.totalorder %s14, 3
    %p79 = por %p77, %p78
    %p80 = scmp.ne.s32.totalorder %s72, %s75
    %p81 = scmp.eq.s32.totalorder %s14, 0
    %p82 = por %p80, %p81
    %p83 = scmp.ne.s32.totalorder %s72, %s75
    %p84 = scmp.eq.s32.totalorder %s19, 3
    %p85 = por %p83, %p84
    %p86 = scmp.ne.s32.totalorder %s75, %s76
    %p87 = scmp.eq.s32.totalorder %s19, 0
    %p88 = por %p86, %p87
    %p89 = scmp.ne.s32.totalorder %s75, %s76
    %p90 = scmp.eq.s32.totalorder %s20, 3
    %p91 = por %p89, %p90
    %p93 = scmp.ne.s32.totalorder %s76, %s92
    %p94 = scmp.eq.s32.totalorder %s20, 0
    %p95 = por %p93, %p94
    %s96 = sadd.s32 %s22, 1
    %p97 = scmp.lt.s32.totalorder %s96, 1
    %s98 = scalar_select %p97, %s96, 1
    %s99 = sadd.s32 %s29, 1
    %p100 = scmp.lt.s32.totalorder %s99, 1
    %s101 = scalar_select %p100, %s99, 1
    %s102 = ssub.s32 %s21, %s33
    %s103 = ssub.s32 %s98, %s101
    %s104 = sor.u32 %s102, %s103
    %p105 = scmp.eq.s32.totalorder %s104, 0
    %s107 = sadd.s32 %s106, 1
    %s108 = scalar_select %p105, %s106, %s107
    %p111 = pneg %p105
    %p112 = scmp.eq.s32.totalorder %s14, 3
    %p113 = por %p111, %p112
    %p114 = scmp.ne.s32.totalorder %s106, %s109
    %p115 = scmp.eq.s32.totalorder %s14, 0
    %p116 = por %p114, %p115
    %p117 = scmp.ne.s32.totalorder %s106, %s109
    %p118 = scmp.eq.s32.totalorder %s19, 3
    %p119 = por %p117, %p118
    %p120 = scmp.ne.s32.totalorder %s109, %s110
    %p121 = scmp.eq.s32.totalorder %s19, 0
    %p122 = por %p120, %p121
    %p123 = scmp.ne.s32.totalorder %s109, %s110
    %p124 = scmp.eq.s32.totalorder %s20, 3
    %p125 = por %p123, %p124
    %p127 = scmp.ne.s32.totalorder %s110, %s126
    %p128 = scmp.eq.s32.totalorder %s20, 0
    %p129 = por %p127, %p128
    %s131 = sadd.s32 %s130, 1
    %p134 = scmp.eq.s32.totalorder %s14, 3
    %p135 = scmp.ne.s32.totalorder %s130, %s132
    %p136 = scmp.eq.s32.totalorder %s14, 0
    %p137 = por %p135, %p136
    %p138 = scmp.ne.s32.totalorder %s130, %s132
    %p139 = scmp.eq.s32.totalorder %s19, 3
    %p140 = por %p138, %p139
    %p141 = scmp.ne.s32.totalorder %s132, %s133
    %p142 = scmp.eq.s32.totalorder %s19, 0
    %p143 = por %p141, %p142
    %p144 = scmp.ne.s32.totalorder %s132, %s133
    %p145 = scmp.eq.s32.totalorder %s20, 3
    %p146 = por %p144, %p145
    %p148 = scmp.ne.s32.totalorder %s133, %s147
    %p149 = scmp.eq.s32.totalorder %s20, 0
    %p150 = por %p148, %p149
    %s152 = sadd.s32 %s151, 1
    %p155 = scmp.eq.s32.totalorder %s14, 3
    %p156 = scmp.ne.s32.totalorder %s151, %s153
    %p157 = scmp.eq.s32.totalorder %s14, 0
    %p158 = por %p156, %p157
    %p159 = scmp.ne.s32.totalorder %s151, %s153
    %p160 = scmp.eq.s32.totalorder %s19, 3
    %p161 = por %p159, %p160
    %p162 = scmp.ne.s32.totalorder %s153, %s154
    %p163 = scmp.eq.s32.totalorder %s19, 0
    %p164 = por %p162, %p163
    %p165 = scmp.ne.s32.totalorder %s153, %s154
    %p166 = scmp.eq.s32.totalorder %s20, 3
    %p167 = por %p165, %p166
    %p169 = scmp.ne.s32.totalorder %s154, %s168
    %p170 = scmp.eq.s32.totalorder %s20, 0
    %p171 = por %p169, %p170
    %s173 = sadd.s32 %s172, 1
    %p176 = scmp.eq.s32.totalorder %s14, 3
    %p177 = scmp.ne.s32.totalorder %s172, %s174
    %p178 = scmp.eq.s32.totalorder %s14, 0
    %p179 = por %p177, %p178
    %p180 = scmp.ne.s32.totalorder %s172, %s174
    %p181 = scmp.eq.s32.totalorder %s19, 3
    %p182 = por %p180, %p181
    %p183 = scmp.ne.s32.totalorder %s174, %s175
    %p184 = scmp.eq.s32.totalorder %s19, 0
    %p185 = por %p183, %p184
    %p186 = scmp.ne.s32.totalorder %s174, %s175
    %p187 = scmp.eq.s32.totalorder %s20, 3
    %p188 = por %p186, %p187
    %p190 = scmp.ne.s32.totalorder %s175, %s189
    %p191 = scmp.eq.s32.totalorder %s20, 0
    %p192 = por %p190, %p191
    %s193 = ssub.s32 %s21, %s33
    %s194 = ssub.s32 %s22, %s29
    %s195 = sor.u32 %s193, %s194
    %p196 = scmp.eq.s32.totalorder %s195, 0
    %s198 = sadd.s32 %s197, 1
    %s199 = scalar_select %p196, %s197, %s198
    %p202 = pneg %p196
    %p203 = scmp.eq.s32.totalorder %s14, 3
    %p204 = por %p202, %p203
    %p205 = scmp.ne.s32.totalorder %s197, %s200
    %p206 = scmp.eq.s32.totalorder %s14, 0
    %p207 = por %p205, %p206
    %p208 = scmp.ne.s32.totalorder %s197, %s200
    %p209 = scmp.eq.s32.totalorder %s19, 3
    %p210 = por %p208, %p209
    %p211 = scmp.ne.s32.totalorder %s200, %s201
    %p212 = scmp.eq.s32.totalorder %s19, 0
    %p213 = por %p211, %p212
    %p214 = scmp.ne.s32.totalorder %s200, %s201
    %p215 = scmp.eq.s32.totalorder %s20, 3
    %p216 = por %p214, %p215
    %p218 = scmp.ne.s32.totalorder %s201, %s217
    %p219 = scmp.eq.s32.totalorder %s20, 0
    %p220 = por %p218, %p219
    %s221 = ssub.s32 %s21, %s33
    %s222 = ssub.s32 %s22, %s29
    %s223 = sor.u32 %s221, %s222
    %p224 = scmp.eq.s32.totalorder %s223, 0
    %s226 = sadd.s32 %s225, 1
    %s227 = scalar_select %p224, %s225, %s226
    %p230 = pneg %p224
    %p231 = scmp.eq.s32.totalorder %s14, 3
    %p232 = por %p230, %p231
    %p233 = scmp.ne.s32.totalorder %s225, %s228
    %p234 = scmp.eq.s32.totalorder %s14, 0
    %p235 = por %p233, %p234
    %p236 = scmp.ne.s32.totalorder %s225, %s228
    %p237 = scmp.eq.s32.totalorder %s19, 3
    %p238 = por %p236, %p237
    %p239 = scmp.ne.s32.totalorder %s228, %s229
    %p240 = scmp.eq.s32.totalorder %s19, 0
    %p241 = por %p239, %p240
    %p242 = scmp.ne.s32.totalorder %s228, %s229
    %p243 = scmp.eq.s32.totalorder %s20, 3
    %p244 = por %p242, %p243
    %p246 = scmp.ne.s32.totalorder %s229, %s245
    %p247 = scmp.eq.s32.totalorder %s20, 0
    %p248 = por %p246, %p247
    %p249 = scmp.le.s32.totalorder 1, %s14
    %p250 = scmp.lt.s32.totalorder %s14, 5
    %p251 = pnand %p249, %p250
    %p252 = pneg %p251
    // Predicated region
    $region9: #{basic_block_forward.4} parent=5 // pred_check
      _
    $region10: #{basic_block_forward.4} parent=5 // pred_check_branch
      %254 = sbr.rel (%p251) target = $region12
    $region11: #{basic_block_forward.4} parent=5 // pred_region
      %s255 = ssub.s32 %s14, 1
      // Predicated region
      $region13: #{basic_block_forward.4} parent=11 // pred_check
        %p256 = pneg %p143
      $region14: #{basic_block_forward.4} parent=11 // pred_check_branch
        %258 = sbr.rel (%p256) target = $region16
      $region15: #{basic_block_forward.4} parent=11 // pred_region
        _
      $region16: #{basic_block_forward.4} parent=11 // pred_fallthru
        _
      // Predicated region
      $region17: #{basic_block_forward.4} parent=11 // pred_check
        %p259 = pneg %p164
      $region18: #{basic_block_forward.4} parent=11 // pred_check_branch
        %261 = sbr.rel (%p259) target = $region20
      $region19: #{basic_block_forward.4} parent=11 // pred_region
        _
      $region20: #{basic_block_forward.4} parent=11 // pred_fallthru
        _
      // Predicated region
      $region21: #{basic_block_forward.4} parent=11 // pred_check
        %p262 = pneg %p185
      $region22: #{basic_block_forward.4} parent=11 // pred_check_branch
        %264 = sbr.rel (%p262) target = $region24
      $region23: #{basic_block_forward.4} parent=11 // pred_region
        _
      $region24: #{basic_block_forward.4} parent=11 // pred_fallthru
        _
    $region12: #{basic_block_forward.4} parent=5 // pred_fallthru
      _
    %p265 = scmp.lt.s32.totalorder %s14, 4
    // Predicated region
    $region25: #{basic_block_forward.4} parent=5 // pred_check
      %p266 = pneg %p265
    $region26: #{basic_block_forward.4} parent=5 // pred_check_branch
      %268 = sbr.rel (%p266) target = $region28
    $region27: #{basic_block_forward.4} parent=5 // pred_region
      // Predicated region
      $region29: #{basic_block_forward.4} parent=27 // pred_check
        %p269 = pneg %p48
      $region30: #{basic_block_forward.4} parent=27 // pred_check_branch
        %271 = sbr.rel (%p269) target = $region32
      $region31: #{basic_block_forward.4} parent=27 // pred_region
        %p272 = scmp.lt.s32.totalorder %s21, 1
        %s273 = scalar_select %p272, %s21, 1
        %p274 = scmp.lt.s32.totalorder %s22, 1
        %s275 = scalar_select %p274, %s22, 1
        %s276 = smul.addr %s273, 2
        %s277 = sadd.s32 %s275, %s276
        %s278 = smul.addr %s277, 8
        %s279 = scalar_lea.vmem %s0, %s278
      $region32: #{basic_block_forward.4} parent=27 // pred_fallthru
        _
      // Predicated region
      $region33: #{basic_block_forward.4} parent=27 // pred_check
        %p280 = pneg %p82
      $region34: #{basic_block_forward.4} parent=27 // pred_check_branch
        %282 = sbr.rel (%p280) target = $region36
      $region35: #{basic_block_forward.4} parent=27 // pred_region
        %s283 = ssub.s32 %s22, 1
        %p284 = scmp.gt.s32.totalorder %s283, 0
        %s285 = scalar_select %p284, %s283, 0
        %p286 = scmp.lt.s32.totalorder %s21, 1
        %s287 = scalar_select %p286, %s21, 1
        %p288 = scmp.lt.s32.totalorder %s285, 1
        %s289 = scalar_select %p288, %s285, 1
        %s290 = smul.addr %s287, 2
        %s291 = sadd.s32 %s289, %s290
        %s292 = smul.addr %s291, 8
        %s293 = scalar_lea.vmem %s1, %s292
        %s294 = ssub.s32 %s22, 1
        %p295 = scmp.gt.s32.totalorder %s294, 0
        %s296 = scalar_select %p295, %s294, 0
      $region36: #{basic_block_forward.4} parent=27 // pred_fallthru
        _
      // Predicated region
      $region37: #{basic_block_forward.4} parent=27 // pred_check
        %p297 = pneg %p116
      $region38: #{basic_block_forward.4} parent=27 // pred_check_branch
        %299 = sbr.rel (%p297) target = $region40
      $region39: #{basic_block_forward.4} parent=27 // pred_region
        %s300 = sadd.s32 %s22, 1
        %p301 = scmp.lt.s32.totalorder %s300, 1
        %s302 = scalar_select %p301, %s300, 1
        %p303 = scmp.lt.s32.totalorder %s21, 1
        %s304 = scalar_select %p303, %s21, 1
        %p305 = scmp.lt.s32.totalorder %s302, 1
        %s306 = scalar_select %p305, %s302, 1
        %s307 = smul.addr %s304, 2
        %s308 = sadd.s32 %s306, %s307
        %s309 = smul.addr %s308, 8
        %s310 = scalar_lea.vmem %s2, %s309
        %s311 = sadd.s32 %s22, 1
        %p312 = scmp.lt.s32.totalorder %s311, 1
        %s313 = scalar_select %p312, %s311, 1
      $region40: #{basic_block_forward.4} parent=27 // pred_fallthru
        _
    $region28: #{basic_block_forward.4} parent=5 // pred_fallthru
      _
    %p314 = scmp.le.s32.totalorder 1, %s14
    %p315 = scmp.lt.s32.totalorder %s14, 5
    %p316 = pnand %p314, %p315
    %p317 = pneg %p316
    // Predicated region
    $region41: #{basic_block_forward.4} parent=5 // pred_check
      _
    $region42: #{basic_block_forward.4} parent=5 // pred_check_branch
      %319 = sbr.rel (%p316) target = $region44
    $region43: #{basic_block_forward.4} parent=5 // pred_region
      %s320 = ssub.s32 %s14, 1
      %p321 = scmp.lt.s32.totalorder %s23, 1
      %s322 = scalar_select %p321, %s23, 1
      %p323 = scmp.lt.s32.totalorder %s24, 1
      %s324 = scalar_select %p323, %s24, 1
      %s325 = smul.addr %s322, 2
      %s326 = sadd.s32 %s324, %s325
      %s327 = smul.addr %s326, 8
      %s328 = scalar_lea.vmem %s0, %s327
      %p329 = pneg %p54
      %p330 = pneg %p51
      %s331 = ssub.s32 %s24, 1
      %p332 = scmp.gt.s32.totalorder %s331, 0
      %s333 = scalar_select %p332, %s331, 0
      %p334 = scmp.lt.s32.totalorder %s23, 1
      %s335 = scalar_select %p334, %s23, 1
      %p336 = scmp.lt.s32.totalorder %s333, 1
      %s337 = scalar_select %p336, %s333, 1
      %s338 = smul.addr %s335, 2
      %s339 = sadd.s32 %s337, %s338
      %s340 = smul.addr %s339, 8
      %s341 = scalar_lea.vmem %s1, %s340
      %p342 = pneg %p88
      %p343 = pneg %p85
      %s344 = sadd.s32 %s24, 1
      %p345 = scmp.lt.s32.totalorder %s344, 1
      %s346 = scalar_select %p345, %s344, 1
      %p347 = scmp.lt.s32.totalorder %s23, 1
      %s348 = scalar_select %p347, %s23, 1
      %p349 = scmp.lt.s32.totalorder %s346, 1
      %s350 = scalar_select %p349, %s346, 1
      %s351 = smul.addr %s348, 2
      %s352 = sadd.s32 %s350, %s351
      %s353 = smul.addr %s352, 8
      %s354 = scalar_lea.vmem %s2, %s353
      %p355 = pneg %p122
      %p356 = pneg %p119
      %p357 = pneg %p143
      %p358 = pneg %p140
      %p359 = pneg %p164
      %p360 = pneg %p161
      %p361 = pneg %p185
      %p362 = pneg %p182
      %p363 = pneg %p213
      %p364 = pneg %p210
      %p365 = scmp.lt.s32.totalorder %s23, 1
      %s366 = scalar_select %p365, %s23, 1
      %p367 = scmp.lt.s32.totalorder %s24, 1
      %s368 = scalar_select %p367, %s24, 1
      %s369 = smul.addr %s366, 2
      %s370 = sadd.s32 %s368, %s369
      %s371 = smul.addr %s370, 8
      %s372 = scalar_lea.vmem %s6, %s371
      %p373 = pneg %p241
      %p374 = pneg %p238
      %p375 = scmp.lt.s32.totalorder %s23, 1
      %s376 = scalar_select %p375, %s23, 1
      %p377 = scmp.lt.s32.totalorder %s24, 1
      %s378 = scalar_select %p377, %s24, 1
      %s379 = smul.addr %s376, 2
      %s380 = sadd.s32 %s378, %s379
      %s381 = smul.addr %s380, 8
      %s382 = scalar_lea.vmem %s7, %s381
      %p383 = scmp.lt.s32.totalorder %s23, 1
      %s384 = scalar_select %p383, %s23, 1
      %p385 = scmp.lt.s32.totalorder %s24, 1
      %s386 = scalar_select %p385, %s24, 1
      %s387 = smul.addr %s384, 2
      %s388 = sadd.s32 %s386, %s387
      %s389 = smul.addr %s388, 8
      %s390 = scalar_lea.vmem %s0, %s389
      %s391 = ssub.s32 %s24, 1
      %p392 = scmp.gt.s32.totalorder %s391, 0
      %s393 = scalar_select %p392, %s391, 0
      %p394 = scmp.lt.s32.totalorder %s23, 1
      %s395 = scalar_select %p394, %s23, 1
      %p396 = scmp.lt.s32.totalorder %s393, 1
      %s397 = scalar_select %p396, %s393, 1
      %s398 = smul.addr %s395, 2
      %s399 = sadd.s32 %s397, %s398
      %s400 = smul.addr %s399, 8
      %s401 = scalar_lea.vmem %s1, %s400
      %s402 = ssub.s32 %s24, 1
      %p403 = scmp.gt.s32.totalorder %s402, 0
      %s404 = scalar_select %p403, %s402, 0
      %s405 = sadd.s32 %s24, 1
      %p406 = scmp.lt.s32.totalorder %s405, 1
      %s407 = scalar_select %p406, %s405, 1
      %p408 = scmp.lt.s32.totalorder %s23, 1
      %s409 = scalar_select %p408, %s23, 1
      %p410 = scmp.lt.s32.totalorder %s407, 1
      %s411 = scalar_select %p410, %s407, 1
      %s412 = smul.addr %s409, 2
      %s413 = sadd.s32 %s411, %s412
      %s414 = smul.addr %s413, 8
      %s415 = scalar_lea.vmem %s2, %s414
      %s416 = sadd.s32 %s24, 1
      %p417 = scmp.lt.s32.totalorder %s416, 1
      %s418 = scalar_select %p417, %s416, 1
      %p419 = scmp.lt.s32.totalorder %s23, 1
      %s420 = scalar_select %p419, %s23, 1
      %p421 = scmp.lt.s32.totalorder %s24, 1
      %s422 = scalar_select %p421, %s24, 1
      %s423 = smul.addr %s420, 2
      %s424 = sadd.s32 %s422, %s423
      %s425 = smul.addr %s424, 8
      %s426 = scalar_lea.vmem %s6, %s425
      %p427 = scmp.lt.s32.totalorder %s23, 1
      %s428 = scalar_select %p427, %s23, 1
      %p429 = scmp.lt.s32.totalorder %s24, 1
      %s430 = scalar_select %p429, %s24, 1
      %s431 = smul.addr %s428, 2
      %s432 = sadd.s32 %s430, %s431
      %s433 = smul.addr %s432, 8
      %s434 = scalar_lea.vmem %s7, %s433
      %p436 = scmp.eq.s32.totalorder %s24, 0
      %v437 = vld [vmem:[%s401 + $0x7] sm:$0x1]
      %v438 = vld [vmem:[%s4] sm:$0x1]
      %v439 = vmul.f32 %v437, %v438
      %v440 = vld [vmem:[%s5] sm:$0x1]
      %v441 = vadd.f32 %v439, %v440
      %v442 = vmax.f32 %v441, 0.0
      %s443 = scalar_select %p436, 1, 0
      %v444 = vstv %s443
      %vm445 = vcmp.eq.s32.totalorder %v444, 1
      %v446 = vsel %vm445, 0.0, %v442
      %p447 = scmp.eq.s32.totalorder %s24, 1
      %v448 = vld [vmem:[%s415] sm:$0x1]
      %v449 = vmul.f32 %v448, %v438
      %v450 = vadd.f32 %v449, %v440
      %v451 = vmax.f32 %v450, 0.0
      %s452 = scalar_select %p447, 1, 0
      %v453 = vstv %s452
      %vm454 = vcmp.eq.s32.totalorder %v453, 1
      %v455 = vsel %vm454, 0.0, %v451
      %v456 = vpack.c.bf16 %v446, %v446
      %vm457 = vcmask 516096
      %vm458 = vsmask.f32 256
      %vm459 = vmand %vm457, %vm458
      %v460 = vld [vmem:[#allocation2] sm:$0x1]
      %v461 = vsel %vm459, %v456, %v460
      %462 = vst [vmem:[#allocation2] sm:$0x1] %v461
      %v463 = vld [vmem:[%s390] sm:$0xff]
      %v464 = vld [vmem:[%s4] sm:$0x1]
      %v466 = vperm.slane %v464, 0
      %v468 = vmul.f32 %v463, %v466
      %v469 = vld [vmem:[%s5] sm:$0x1]
      %v471 = vperm.slane %v469, 0
      %v473 = vadd.f32 %v468, %v471
      %v474 = vmax.f32 %v473, 0.0
      %v475 = vpack.c.bf16 %v474, %v474
      %v477 = vshrl.u32 %v475, 16
      %v479 = vrot.slane %v477, 7
      %v480 = vshll.u32 %v475, 16
      %v482 = vor.u32 %v479, %v480
      %v483 = vrot.slane %v479, 4
      %vm486 = vcmask 519168
      %vm487 = vsmask.f32 7938
      %vm488 = vmand %vm486, %vm487
      %v489 = vld [vmem:[#allocation2] sm:$0xf]
      %v490 = vsel %vm488, %v482, %v489
      %491 = vst [vmem:[#allocation2] sm:$0xf] %v490
      %v492 = vld [vmem:[#allocation2 + $0x4] sm:$0x1]
      %v493 = vsel %vm459, %v483, %v492
      %494 = vst [vmem:[#allocation2 + $0x4] sm:$0x1] %v493
      %v495 = vpack.c.bf16 %v455, %v455
      %v497 = vshll.u32 %v495, 16
      %vm500 = vmand %vm457, %vm487
      %v501 = vld [vmem:[#allocation2 + $0x4] sm:$0x1]
      %v502 = vsel %vm500, %v497, %v501
      %503 = vst [vmem:[#allocation2 + $0x4] sm:$0x1] %v502
      %v504 = vld [vmem:[#allocation2] sm:$0xf]
      %v505 = vld [vmem:[%s3] sm:$0xf]
      %v506 = vld [vmem:[%s3 + $0x4] sm:$0xf]
      %v507 = vld [vmem:[%s3 + $0x8] sm:$0xf]
      %v508 = vld [vmem:[%s3 + $0xc] sm:$0xf]
      %v509 = vld [vmem:[%s3 + $0x10] sm:$0xf]
      %v510 = vld [vmem:[%s3 + $0x14] sm:$0xf]
      %v511 = vld [vmem:[%s3 + $0x18] sm:$0xf]
      %v512 = vld [vmem:[%s3 + $0x1c] sm:$0xf]
      %v513 = vld [vmem:[#allocation2 + $0x4] sm:$0x1]
      %s514 = scalar_lea.vmem %s3, 32
      %v515 = vld [vmem:[%s514] sm:$0xf]
      %v516 = vld [vmem:[%s514 + $0x4] sm:$0xf]
      %v517 = vld [vmem:[%s514 + $0x8] sm:$0xf]
      %v518 = vld [vmem:[%s514 + $0xc] sm:$0xf]
      %v519 = vld [vmem:[%s514 + $0x10] sm:$0xf]
      %v520 = vld [vmem:[%s514 + $0x14] sm:$0xf]
      %v521 = vld [vmem:[%s514 + $0x18] sm:$0xf]
      %v522 = vld [vmem:[%s514 + $0x1c] sm:$0xf]
      %v525 = vunpack.c.l.b16 %v504
      %v526 = vunpack.c.l.b16 %v513
      %v527 = vpack.c.b16 %v526, %v525
      %v529 = vshrl.u32 %v527, 16
      %v531 = vshll.u32 %v527, 16
      %v533 = vrot.slane %v531, 1
      %v534 = vor.u32 %v529, %v533
      %v543 = vunpack.c.l.b16 %v515
      %v544 = vunpack.c.l.b16 %v516
      %v545 = vunpack.c.l.b16 %v517
      %v546 = vunpack.c.l.b16 %v518
      %v547 = vunpack.c.l.b16 %v519
      %v548 = vunpack.c.l.b16 %v520
      %v549 = vunpack.c.l.b16 %v521
      %v550 = vunpack.c.l.b16 %v522
      %v551 = vpack.c.b16 %v544, %v543
      %v552 = vpack.c.b16 %v546, %v545
      %v553 = vpack.c.b16 %v548, %v547
      %v554 = vpack.c.b16 %v550, %v549
      %vm559 = vcmask 523264
      %v561 = vsel %vm559, %v534, 0
      %563 = vmatpush.bf16.msra.mxu0 0
      %564 = vmatpush.bf16.msra.mxu0 0
      %565 = vmatpush.bf16.msra.mxu0 0
      %566 = vmatpush.bf16.msra.mxu0 0
      %567 = vmatpush.bf16.msra.mxu0 %v554
      %568 = vmatpush.bf16.msra.mxu0 %v553
      %569 = vmatpush.bf16.msra.mxu0 %v552
      %570 = vmatpush.bf16.msra.mxu0 %v551
      %571 = vmatmul.bf16.gmra.mxu0 %v561
      %v572 = vpop.f32.mrf.mxu0
      %v573 = vadd.f32 0.0, %v572
      %v574 = vpop.f32.mrf.mxu0
      %575 = vdwg.mxu0
      %v584 = vunpack.c.l.b16 %v505
      %v585 = vunpack.c.l.b16 %v506
      %v586 = vunpack.c.l.b16 %v507
      %v587 = vunpack.c.l.b16 %v508
      %v588 = vunpack.c.l.b16 %v509
      %v589 = vunpack.c.l.b16 %v510
      %v590 = vunpack.c.l.b16 %v511
      %v591 = vunpack.c.l.b16 %v512
      %v592 = vpack.c.b16 %v585, %v584
      %v593 = vpack.c.b16 %v587, %v586
      %v594 = vpack.c.b16 %v589, %v588
      %v595 = vpack.c.b16 %v591, %v590
      %v601 = vsel %vm559, %v504, 0
      %603 = vmatpush.bf16.msra.mxu0 0
      %604 = vmatpush.bf16.msra.mxu0 0
      %605 = vmatpush.bf16.msra.mxu0 0
      %606 = vmatpush.bf16.msra.mxu0 0
      %607 = vmatpush.bf16.msra.mxu0 %v595
      %608 = vmatpush.bf16.msra.mxu0 %v594
      %609 = vmatpush.bf16.msra.mxu0 %v593
      %610 = vmatpush.bf16.msra.mxu0 %v592
      %611 = vmatmul.bf16.gmra.mxu0 %v601
      %v612 = vpop.f32.mrf.mxu0
      %v613 = vadd.f32 %v573, %v612
      %v614 = vpop.f32.mrf.mxu0
      %615 = vdwg.mxu0
      %v616 = vld [vmem:[#allocation2] sm:$0xe]
      %s617 = scalar_lea.vmem %s3, 64
      %v618 = vld [vmem:[%s617] sm:$0xf]
      %v619 = vld [vmem:[%s617 + $0x4] sm:$0xf]
      %v620 = vld [vmem:[%s617 + $0x8] sm:$0xf]
      %v621 = vld [vmem:[%s617 + $0xc] sm:$0xf]
      %v622 = vld [vmem:[%s617 + $0x10] sm:$0xf]
      %v623 = vld [vmem:[%s617 + $0x14] sm:$0xf]
      %v624 = vld [vmem:[%s617 + $0x18] sm:$0xf]
      %v625 = vld [vmem:[%s617 + $0x1c] sm:$0xf]
      %v627 = vunpack.c.l.b16 %v616
      %v628 = vpack.c.b16 %v526, %v627
      %v629 = vrot.slane %v628, 1
      %v638 = vunpack.c.l.b16 %v618
      %v639 = vunpack.c.l.b16 %v619
      %v640 = vunpack.c.l.b16 %v620
      %v641 = vunpack.c.l.b16 %v621
      %v642 = vunpack.c.l.b16 %v622
      %v643 = vunpack.c.l.b16 %v623
      %v644 = vunpack.c.l.b16 %v624
      %v645 = vunpack.c.l.b16 %v625
      %v646 = vpack.c.b16 %v639, %v638
      %v647 = vpack.c.b16 %v641, %v640
      %v648 = vpack.c.b16 %v643, %v642
      %v649 = vpack.c.b16 %v645, %v644
      %v655 = vsel %vm559, %v629, 0
      %657 = vmatpush.bf16.msra.mxu0 0
      %658 = vmatpush.bf16.msra.mxu0 0
      %659 = vmatpush.bf16.msra.mxu0 0
      %660 = vmatpush.bf16.msra.mxu0 0
      %661 = vmatpush.bf16.msra.mxu0 %v649
      %662 = vmatpush.bf16.msra.mxu0 %v648
      %663 = vmatpush.bf16.msra.mxu0 %v647
      %664 = vmatpush.bf16.msra.mxu0 %v646
      %665 = vmatmul.bf16.gmra.mxu0 %v655
      %v666 = vpop.f32.mrf.mxu0
      %v667 = vadd.f32 0.0, %v666
      %v668 = vpop.f32.mrf.mxu0
      %669 = vdwg.mxu0
      %v670 = vadd.f32 %v613, %v667
      %671 = vst.msk [vmem:[%s426] sm:$0xff] %vm559, %v670
      %v672 = vsel %vm559, %v670, 0.0
      %v673 = vrot.slane %v672, 4
      %v674 = vadd.f32 %v672, %v673
      %v675 = vrot.slane %v674, 2
      %v676 = vadd.f32 %v674, %v675
      %v677 = vrot.slane %v676, 1
      %v678 = vadd.f32 %v676, %v677
      %v679 = vmul.f32 %v670, %v670
      %v680 = vsel %vm559, %v679, 0.0
      %v681 = vrot.slane %v680, 4
      %v682 = vadd.f32 %v680, %v681
      %v683 = vrot.slane %v682, 2
      %v684 = vadd.f32 %v682, %v683
      %v685 = vrot.slane %v684, 1
      %v686 = vadd.f32 %v684, %v685
      %vm687 = vcmask 1040384
      %v688 = vsel %vm687, %v678, %v686
      %vm689 = vcmask 1041408
      %v690 = vsel %vm689, %v688, 0.0
      %691 = vst.msk [vmem:[%s434] sm:$0xff] %vm559, %v690
      %p692 = scmp.lt.s32.totalorder %s23, 1
      %s693 = scalar_select %p692, %s23, 1
      %p694 = scmp.lt.s32.totalorder %s24, 1
      %s695 = scalar_select %p694, %s24, 1
      %s696 = smul.addr %s693, 2
      %s697 = sadd.s32 %s695, %s696
      %s698 = smul.addr %s697, 8
      %s699 = scalar_lea.vmem %s6, %s698
      %p700 = scmp.lt.s32.totalorder %s23, 1
      %s701 = scalar_select %p700, %s23, 1
      %p702 = scmp.lt.s32.totalorder %s24, 1
      %s703 = scalar_select %p702, %s24, 1
      %s704 = smul.addr %s701, 2
      %s705 = sadd.s32 %s703, %s704
      %s706 = smul.addr %s705, 8
      %s707 = scalar_lea.vmem %s7, %s706
      // Predicated region
      $region45: #{basic_block_forward.4} parent=43 // pred_check
        %p708 = pneg %p210
      $region46: #{basic_block_forward.4} parent=43 // pred_check_branch
        %710 = sbr.rel (%p708) target = $region48
      $region47: #{basic_block_forward.4} parent=43 // pred_region
        _
      $region48: #{basic_block_forward.4} parent=43 // pred_fallthru
        _
      // Predicated region
      $region49: #{basic_block_forward.4} parent=43 // pred_check
        %p711 = pneg %p238
      $region50: #{basic_block_forward.4} parent=43 // pred_check_branch
        %713 = sbr.rel (%p711) target = $region52
      $region51: #{basic_block_forward.4} parent=43 // pred_region
        _
      $region52: #{basic_block_forward.4} parent=43 // pred_fallthru
        _
    $region44: #{basic_block_forward.4} parent=5 // pred_fallthru
      _
    %p714 = scmp.le.s32.totalorder 2, %s14
    // Predicated region
    $region53: #{basic_block_forward.4} parent=5 // pred_check
      %p715 = pneg %p714
    $region54: #{basic_block_forward.4} parent=5 // pred_check_branch
      %717 = sbr.rel (%p715) target = $region56
    $region55: #{basic_block_forward.4} parent=5 // pred_region
      %s718 = ssub.s32 %s14, 2
      // Predicated region
      $region57: #{basic_block_forward.4} parent=55 // pred_check
        %p719 = pneg %p216
      $region58: #{basic_block_forward.4} parent=55 // pred_check_branch
        %721 = sbr.rel (%p719) target = $region60
      $region59: #{basic_block_forward.4} parent=55 // pred_region
        %p722 = scmp.lt.s32.totalorder %s25, 1
        %s723 = scalar_select %p722, %s25, 1
        %p724 = scmp.lt.s32.totalorder %s26, 1
        %s725 = scalar_select %p724, %s26, 1
        %s726 = smul.addr %s723, 2
        %s727 = sadd.s32 %s725, %s726
        %s728 = smul.addr %s727, 8
        %s729 = scalar_lea.vmem %s6, %s728
      $region60: #{basic_block_forward.4} parent=55 // pred_fallthru
        _
      // Predicated region
      $region61: #{basic_block_forward.4} parent=55 // pred_check
        %p730 = pneg %p244
      $region62: #{basic_block_forward.4} parent=55 // pred_check_branch
        %732 = sbr.rel (%p730) target = $region64
      $region63: #{basic_block_forward.4} parent=55 // pred_region
        %p733 = scmp.lt.s32.totalorder %s25, 1
        %s734 = scalar_select %p733, %s25, 1
        %p735 = scmp.lt.s32.totalorder %s26, 1
        %s736 = scalar_select %p735, %s26, 1
        %s737 = smul.addr %s734, 2
        %s738 = sadd.s32 %s736, %s737
        %s739 = smul.addr %s738, 8
        %s740 = scalar_lea.vmem %s7, %s739
      $region64: #{basic_block_forward.4} parent=55 // pred_fallthru
        _
    $region56: #{basic_block_forward.4} parent=5 // pred_fallthru
      _
  $region6: #{basic_block_forward.4} parent=0 // loop_footer
    %s18 = sadd.s32 1, %s14
  $region7: #{basic_block_forward.4} parent=0 // loop_footer_branch
    %13 = sbr.rel target = $region3
  $region8: #{basic_block_forward.4} parent=0 // loop_exit
    _

</llo_original>
